<compile_context>
chip_gen: v7x
topology: tpu7x:2x2x1
jax: 0.10.0
libtpu: 0.0.40
codegen_flags: <defaults>
</compile_context>

<pallas_src>
import functools

import jax
import jax.numpy as jnp
from jax.experimental import pallas as pl
from jax.experimental.pallas import tpu as pltpu


# ----------------------------------------------------------------------------
# Fused kernel: whole Encoder forward, everything resident in VMEM/vregs
# ----------------------------------------------------------------------------

def _encoder_kernel(
    a_wide_ref, x_bd_ref,
    wu_ref, bu_ref, wc_ref, bc_ref,
    wou_ref, bou_ref, woc_ref, boc_ref,
    wq_ref, wk_ref, wv_ref,
    sumh_ref, expand_ref, collapse_ref,
    w1_ref, b1_ref, w2_ref, b2_ref,
    out_ref,
    *, n_u, seq_len, hidden_dim, output_dim,
):
    S, H, O, Nu = seq_len, hidden_dim, output_dim, n_u

    # ---- HetGCN, all timesteps fused -----------------------------------
    # TODO(synk): HetGCN body is not given in the reference; modeled as
    # neighborhood aggregation + per-type linear + ReLU + linear output head.
    # agg: one MXU call, K = S*2N (lane-packed over t on the output side).
    agg = jnp.dot(a_wide_ref[...], x_bd_ref[...],
                  preferred_element_type=jnp.float32)            # (2N, S*D)

    h_u = jnp.maximum(
        jnp.dot(agg[:Nu], wu_ref[...], preferred_element_type=jnp.float32)
        + bu_ref[...], 0.0)                                      # (Nu, S*H)
    h_c = jnp.maximum(
        jnp.dot(agg[Nu:], wc_ref[...], preferred_element_type=jnp.float32)
        + bc_ref[...], 0.0)                                      # (Nc, S*H)
    y_u = (jnp.dot(h_u, wou_ref[...], preferred_element_type=jnp.float32)
           + bou_ref[...])                                       # (Nu, S*O)
    y_c = (jnp.dot(h_c, woc_ref[...], preferred_element_type=jnp.float32)
           + boc_ref[...])                                       # (Nc, S*O)

    # Reference pairing: attention(c_embeds, y_u) -> out_u; attention(u_embeds,
    # y_c) -> out_c.  So queries/keys come from the swapped embedding order and
    # values / outputs stay in natural [U; C] order.  One sublane concat each.
    kv = jnp.concatenate([h_c, h_u], axis=0)                     # (2N, S*H)
    val = jnp.concatenate([y_u, y_c], axis=0)                    # (2N, S*O)

    # ---- Dual self-attention over the sequence axis --------------------
    # TODO(synk): Dual_SelfAttention body is not given; modeled as per-node
    # scaled-dot-product attention over the seq axis (Q,K from embeddings,
    # V from the y sequence).  1/sqrt(H) is folded into wq in the wrapper.
    q = jnp.dot(kv, wq_ref[...], preferred_element_type=jnp.float32)   # (2N, S*H)
    k = jnp.dot(kv, wk_ref[...], preferred_element_type=jnp.float32)   # (2N, S*H)
    v = jnp.dot(val, wv_ref[...], preferred_element_type=jnp.float32)  # (2N, S*O)

    sumh = sumh_ref[...]          # (S*H, S)   segmented lane-sum (MXU)
    expand = expand_ref[...]      # (S, S*O)   broadcast p over O lanes (MXU)
    collapse = collapse_ref[...]  # (S*O, O)   segmented sum over j (MXU)

    attn_cols = []
    for i in range(S):
        q_i = jnp.tile(q[:, i * H:(i + 1) * H], (1, S))          # (2N, S*H)
        s_i = jnp.dot(q_i * k, sumh,
                      preferred_element_type=jnp.float32)        # (2N, S)
        m_i = jnp.max(s_i, axis=-1, keepdims=True)
        p_i = jnp.exp(s_i - m_i)
        p_i = p_i / jnp.sum(p_i, axis=-1, keepdims=True)         # exact divide
        p_exp = jnp.dot(p_i, expand,
                        preferred_element_type=jnp.float32)      # (2N, S*O)
        attn_i = jnp.dot(p_exp * v, collapse,
                         preferred_element_type=jnp.float32)     # (2N, O)
        attn_cols.append(attn_i)
    attn = jnp.concatenate(attn_cols, axis=-1)                   # (2N, S*O)

    # ---- dense + flatten + MLP head (dense pre-folded into w1) ---------
    # TODO(synk): self.dense is never defined in the reference __init__ and
    # nn.Linear(seq_len*output_dim, output_dim, hidden_dim=256) is invalid;
    # modeled as a shared Linear(O, O) followed by a 2-layer MLP (hidden 256).
    h1 = jnp.maximum(
        jnp.dot(attn, w1_ref[...], preferred_element_type=jnp.float32)
        + b1_ref[...], 0.0)                                      # (2N, 256)
    out = (jnp.dot(h1, w2_ref[...], preferred_element_type=jnp.float32)
           + b2_ref[...])                                        # (2N, O)
    out_ref[...] = out


# ----------------------------------------------------------------------------
# Wrapper: parameter packing (block-diag / folding) + one pallas_call
# ----------------------------------------------------------------------------

def _block_diag(mats):
    """(S, a, b) -> (S*a, S*b) block-diagonal."""
    s, a, b = mats.shape
    eye = jnp.eye(s, dtype=mats.dtype)
    return jnp.einsum("st,sab->satb", eye, mats).reshape(s * a, s * b)


@jax.jit
def encoder_forward(params, w_uu_seq, w_uc_seq, w_cc_seq, x_u, x_c):
    # TODO(synk): the reference feeds ST_Block outputs back as HetGCN node
    # features for layers > 1, which is shape-inconsistent with input_dim;
    # a single ST_Block pass (n_layers=1) is fused here.
    lp = params["st_blocks"][0]
    het, attn = lp["hetgcn"], lp["attn"]
    dense, mlp = params["dense"], params["mlp"]

    S = w_uu_seq.shape[0]
    Nu, Nc = x_u.shape[0], x_c.shape[0]
    assert Nu == Nc, "reference attention pairing requires Nu == Nc"
    H = attn["wq"].shape[0]
    O = het["w_out_u"].shape[-1]
    N2 = Nu + Nc

    # Block adjacency A_t = [[w_uu, w_uc],[w_uc^T, w_cc]], lane-packed over t.
    a_top = jnp.concatenate([w_uu_seq, w_uc_seq], axis=2)
    a_bot = jnp.concatenate([jnp.swapaxes(w_uc_seq, 1, 2), w_cc_seq], axis=2)
    a_seq = jnp.concatenate([a_top, a_bot], axis=1)               # (S, 2N, 2N)
    a_wide = jnp.swapaxes(a_seq, 0, 1).reshape(N2, S * N2)        # (2N, S*2N)

    x_all = jnp.concatenate([x_u, x_c], axis=0)                   # (2N, D)
    x_bd = jnp.kron(jnp.eye(S, dtype=x_all.dtype), x_all)         # (S*2N, S*D)

    # Per-timestep HetGCN weights -> block-diagonal (one matmul per stage).
    wu_bd = _block_diag(het["w_u"])                               # (S*D, S*H)
    wc_bd = _block_diag(het["w_c"])
    wou_bd = _block_diag(het["w_out_u"])                          # (S*H, S*O)
    woc_bd = _block_diag(het["w_out_c"])
    bu = het["b_u"].reshape(1, S * H)
    bc = het["b_c"].reshape(1, S * H)
    bou = het["b_out_u"].reshape(1, S * O)
    boc = het["b_out_c"].reshape(1, S * O)

    scale = 1.0 / (float(H) ** 0.5)
    eye_s = jnp.eye(S, dtype=jnp.float32)
    wq_bd = jnp.kron(eye_s, attn["wq"] * scale)                   # scale folded
    wk_bd = jnp.kron(eye_s, attn["wk"])
    wv_bd = jnp.kron(eye_s, attn["wv"])

    # Constant MXU matrices for segmented reduce / broadcast in attention.
    sumh = jnp.kron(eye_s, jnp.ones((H, 1), jnp.float32))         # (S*H, S)
    expand = jnp.kron(eye_s, jnp.ones((1, O), jnp.float32))       # (S, S*O)
    collapse = jnp.kron(jnp.ones((S, 1), jnp.float32),
                        jnp.eye(O, dtype=jnp.float32))            # (S*O, O)

    # Fold the shared dense Linear(O, O) into the first MLP layer.
    w1_blocks = mlp["w1"].reshape(S, O, -1)                       # (S, O, 256)
    fused_w1 = jnp.einsum("ij,sjm->sim", dense["w"],
                          w1_blocks).reshape(S * O, -1)           # (S*O, 256)
    fused_b1 = mlp["b1"] + dense["b"] @ w1_blocks.sum(axis=0)     # (1, 256)

    out = pl.pallas_call(
        functools.partial(_encoder_kernel, n_u=Nu, seq_len=S,
                          hidden_dim=H, output_dim=O),
        out_shape=jax.ShapeDtypeStruct((N2, O), jnp.float32),
        compiler_params=pltpu.CompilerParams(
            vmem_limit_bytes=32 * 1024 * 1024),
    )(a_wide, x_bd, wu_bd, bu, wc_bd, bc, wou_bd, bou, woc_bd, boc,
      wq_bd, wk_bd, wv_bd, sumh, expand, collapse,
      fused_w1, fused_b1, mlp["w2"], mlp["b2"])

    return out[:Nu], out[Nu:]


# ----------------------------------------------------------------------------
# Deterministic parameter init
# ----------------------------------------------------------------------------

def _w(key, shape, scale=0.1):
    return scale * jax.random.normal(key, shape, dtype=jnp.float32)


def init_params(key, input_dim, hidden_dim, output_dim, seq_len, n_layers,
                mlp_hidden=256):
    keys = jax.random.split(key, n_layers + 2)
    st_blocks = []
    for l in range(n_layers):
        k = jax.random.split(keys[l], 11)
        hetgcn = {
            "w_u": _w(k[0], (seq_len, input_dim, hidden_dim)),
            "b_u": _w(k[1], (seq_len, 1, hidden_dim)),
            "w_c": _w(k[2], (seq_len, input_dim, hidden_dim)),
            "b_c": _w(k[3], (seq_len, 1, hidden_dim)),
            "w_out_u": _w(k[4], (seq_len, hidden_dim, output_dim)),
            "b_out_u": _w(k[5], (seq_len, 1, output_dim)),
            "w_out_c": _w(k[6], (seq_len, hidden_dim, output_dim)),
            "b_out_c": _w(k[7], (seq_len, 1, output_dim)),
        }
        attn = {
            "wq": _w(k[8], (hidden_dim, hidden_dim)),
            "wk": _w(k[9], (hidden_dim, hidden_dim)),
            "wv": _w(k[10], (output_dim, output_dim)),
        }
        st_blocks.append({"hetgcn": hetgcn, "attn": attn})

    kd = jax.random.split(keys[n_layers], 2)
    dense = {"w": _w(kd[0], (output_dim, output_dim)),
             "b": _w(kd[1], (1, output_dim))}

    km = jax.random.split(keys[n_layers + 1], 4)
    mlp = {"w1": _w(km[0], (seq_len * output_dim, mlp_hidden)),
           "b1": _w(km[1], (1, mlp_hidden)),
           "w2": _w(km[2], (mlp_hidden, output_dim)),
           "b2": _w(km[3], (1, output_dim))}

    return {"st_blocks": st_blocks, "dense": dense, "mlp": mlp}


# ----------------------------------------------------------------------------
# Demo
# ----------------------------------------------------------------------------

if __name__ == "__main__":
    input_dim, hidden_dim, output_dim = 8, 16, 16
    seq_len, n_layers = 4, 1
    N_u, N_c = 16, 16

    key = jax.random.PRNGKey(0)
    k_in, k_par = jax.random.split(key)
    ks = jax.random.split(k_in, 5)

    w_uu_seq = jax.random.normal(ks[0], (seq_len, N_u, N_u), dtype=jnp.float32)
    w_uc_seq = jax.random.normal(ks[1], (seq_len, N_u, N_c), dtype=jnp.float32)
    w_cc_seq = jax.random.normal(ks[2], (seq_len, N_c, N_c), dtype=jnp.float32)
    X_U = jax.random.normal(ks[3], (N_u, input_dim), dtype=jnp.float32)
    X_C = jax.random.normal(ks[4], (N_c, input_dim), dtype=jnp.float32)

    params = init_params(k_par, input_dim, hidden_dim, output_dim,
                         seq_len, n_layers)

    out_u, out_c = encoder_forward(params, w_uu_seq, w_uc_seq, w_cc_seq,
                                   X_U, X_C)
    jax.block_until_ready((out_u, out_c))
    assert out_u.shape == (N_u, output_dim)
    assert out_c.shape == (N_c, output_dim)
    assert bool(jnp.all(jnp.isfinite(out_u))) and bool(jnp.all(jnp.isfinite(out_c)))
    print("KERNEL_OK")
</pallas_src>

<mosaic_0001>
module attributes {stable_mosaic.version = 11 : i64} {
  func.func @_encoder_kernel(%arg0: memref<32x128xf32, #tpu.memory_space<vmem>>, %arg1: memref<128x32xf32, #tpu.memory_space<vmem>>, %arg2: memref<32x64xf32, #tpu.memory_space<vmem>>, %arg3: memref<1x64xf32, #tpu.memory_space<vmem>>, %arg4: memref<32x64xf32, #tpu.memory_space<vmem>>, %arg5: memref<1x64xf32, #tpu.memory_space<vmem>>, %arg6: memref<64x64xf32, #tpu.memory_space<vmem>>, %arg7: memref<1x64xf32, #tpu.memory_space<vmem>>, %arg8: memref<64x64xf32, #tpu.memory_space<vmem>>, %arg9: memref<1x64xf32, #tpu.memory_space<vmem>>, %arg10: memref<64x64xf32, #tpu.memory_space<vmem>>, %arg11: memref<64x64xf32, #tpu.memory_space<vmem>>, %arg12: memref<64x64xf32, #tpu.memory_space<vmem>>, %arg13: memref<64x4xf32, #tpu.memory_space<vmem>>, %arg14: memref<4x64xf32, #tpu.memory_space<vmem>>, %arg15: memref<64x16xf32, #tpu.memory_space<vmem>>, %arg16: memref<64x256xf32, #tpu.memory_space<vmem>>, %arg17: memref<1x256xf32, #tpu.memory_space<vmem>>, %arg18: memref<256x16xf32, #tpu.memory_space<vmem>>, %arg19: memref<1x16xf32, #tpu.memory_space<vmem>>, %arg20: memref<32x16xf32, #tpu.memory_space<vmem>>) attributes {dimension_semantics = [], scalar_prefetch = 0 : i64, scratch_operands = 0 : i64, tpu.core_type = #tpu.core_type<tc>} {
    %c0 = arith.constant 0 : index
    %c0_0 = arith.constant 0 : index
    %0 = vector.load %arg0[%c0, %c0_0] : memref<32x128xf32, #tpu.memory_space<vmem>>, vector<32x128xf32>
    %c0_1 = arith.constant 0 : index
    %c0_2 = arith.constant 0 : index
    %1 = vector.load %arg1[%c0_1, %c0_2] : memref<128x32xf32, #tpu.memory_space<vmem>>, vector<128x32xf32>
    %cst = arith.constant dense<0.000000e+00> : vector<32x32xf32>
    %2 = tpu.matmul %0, %1, %cst {dimension_numbers = #tpu.dot_dimension_numbers<[1], [0], [0], [1], [0, 0, 1, 1], [], []>} : vector<32x128xf32>, vector<128x32xf32>, vector<32x32xf32> -> vector<32x32xf32>
    %3 = vector.extract_strided_slice %2 {offsets = [0, 0], sizes = [16, 32], strides = [1, 1]} : vector<32x32xf32> to vector<16x32xf32>
    %c0_3 = arith.constant 0 : index
    %c0_4 = arith.constant 0 : index
    %4 = vector.load %arg2[%c0_3, %c0_4] : memref<32x64xf32, #tpu.memory_space<vmem>>, vector<32x64xf32>
    %cst_5 = arith.constant dense<0.000000e+00> : vector<16x64xf32>
    %5 = tpu.matmul %3, %4, %cst_5 {dimension_numbers = #tpu.dot_dimension_numbers<[1], [0], [0], [1], [0, 0, 1, 1], [], []>} : vector<16x32xf32>, vector<32x64xf32>, vector<16x64xf32> -> vector<16x64xf32>
    %c0_6 = arith.constant 0 : index
    %c0_7 = arith.constant 0 : index
    %6 = vector.load %arg3[%c0_6, %c0_7] : memref<1x64xf32, #tpu.memory_space<vmem>>, vector<1x64xf32>
    %7 = vector.broadcast %6 : vector<1x64xf32> to vector<16x64xf32>
    %8 = arith.addf %5, %7 : vector<16x64xf32>
    %cst_8 = arith.constant 0.000000e+00 : f32
    %9 = vector.broadcast %cst_8 : f32 to vector<16x64xf32>
    %10 = arith.maximumf %8, %9 : vector<16x64xf32>
    %11 = vector.extract_strided_slice %2 {offsets = [16, 0], sizes = [16, 32], strides = [1, 1]} : vector<32x32xf32> to vector<16x32xf32>
    %c0_9 = arith.constant 0 : index
    %c0_10 = arith.constant 0 : index
    %12 = vector.load %arg4[%c0_9, %c0_10] : memref<32x64xf32, #tpu.memory_space<vmem>>, vector<32x64xf32>
    %cst_11 = arith.constant dense<0.000000e+00> : vector<16x64xf32>
    %13 = tpu.matmul %11, %12, %cst_11 {dimension_numbers = #tpu.dot_dimension_numbers<[1], [0], [0], [1], [0, 0, 1, 1], [], []>} : vector<16x32xf32>, vector<32x64xf32>, vector<16x64xf32> -> vector<16x64xf32>
    %c0_12 = arith.constant 0 : index
    %c0_13 = arith.constant 0 : index
    %14 = vector.load %arg5[%c0_12, %c0_13] : memref<1x64xf32, #tpu.memory_space<vmem>>, vector<1x64xf32>
    %15 = vector.broadcast %14 : vector<1x64xf32> to vector<16x64xf32>
    %16 = arith.addf %13, %15 : vector<16x64xf32>
    %cst_14 = arith.constant 0.000000e+00 : f32
    %17 = vector.broadcast %cst_14 : f32 to vector<16x64xf32>
    %18 = arith.maximumf %16, %17 : vector<16x64xf32>
    %c0_15 = arith.constant 0 : index
    %c0_16 = arith.constant 0 : index
    %19 = vector.load %arg6[%c0_15, %c0_16] : memref<64x64xf32, #tpu.memory_space<vmem>>, vector<64x64xf32>
    %cst_17 = arith.constant dense<0.000000e+00> : vector<16x64xf32>
    %20 = tpu.matmul %10, %19, %cst_17 {dimension_numbers = #tpu.dot_dimension_numbers<[1], [0], [0], [1], [0, 0, 1, 1], [], []>} : vector<16x64xf32>, vector<64x64xf32>, vector<16x64xf32> -> vector<16x64xf32>
    %c0_18 = arith.constant 0 : index
    %c0_19 = arith.constant 0 : index
    %21 = vector.load %arg7[%c0_18, %c0_19] : memref<1x64xf32, #tpu.memory_space<vmem>>, vector<1x64xf32>
    %22 = vector.broadcast %21 : vector<1x64xf32> to vector<16x64xf32>
    %23 = arith.addf %20, %22 : vector<16x64xf32>
    %c0_20 = arith.constant 0 : index
    %c0_21 = arith.constant 0 : index
    %24 = vector.load %arg8[%c0_20, %c0_21] : memref<64x64xf32, #tpu.memory_space<vmem>>, vector<64x64xf32>
    %cst_22 = arith.constant dense<0.000000e+00> : vector<16x64xf32>
    %25 = tpu.matmul %18, %24, %cst_22 {dimension_numbers = #tpu.dot_dimension_numbers<[1], [0], [0], [1], [0, 0, 1, 1], [], []>} : vector<16x64xf32>, vector<64x64xf32>, vector<16x64xf32> -> vector<16x64xf32>
    %c0_23 = arith.constant 0 : index
    %c0_24 = arith.constant 0 : index
    %26 = vector.load %arg9[%c0_23, %c0_24] : memref<1x64xf32, #tpu.memory_space<vmem>>, vector<1x64xf32>
    %27 = vector.broadcast %26 : vector<1x64xf32> to vector<16x64xf32>
    %28 = arith.addf %25, %27 : vector<16x64xf32>
    %29 = tpu.concatenate %18, %10 in 0 : vector<16x64xf32>, vector<16x64xf32> -> vector<32x64xf32>
    %30 = tpu.concatenate %23, %28 in 0 : vector<16x64xf32>, vector<16x64xf32> -> vector<32x64xf32>
    %c0_25 = arith.constant 0 : index
    %c0_26 = arith.constant 0 : index
    %31 = vector.load %arg10[%c0_25, %c0_26] : memref<64x64xf32, #tpu.memory_space<vmem>>, vector<64x64xf32>
    %cst_27 = arith.constant dense<0.000000e+00> : vector<32x64xf32>
    %32 = tpu.matmul %29, %31, %cst_27 {dimension_numbers = #tpu.dot_dimension_numbers<[1], [0], [0], [1], [0, 0, 1, 1], [], []>} : vector<32x64xf32>, vector<64x64xf32>, vector<32x64xf32> -> vector<32x64xf32>
    %c0_28 = arith.constant 0 : index
    %c0_29 = arith.constant 0 : index
    %33 = vector.load %arg11[%c0_28, %c0_29] : memref<64x64xf32, #tpu.memory_space<vmem>>, vector<64x64xf32>
    %cst_30 = arith.constant dense<0.000000e+00> : vector<32x64xf32>
    %34 = tpu.matmul %29, %33, %cst_30 {dimension_numbers = #tpu.dot_dimension_numbers<[1], [0], [0], [1], [0, 0, 1, 1], [], []>} : vector<32x64xf32>, vector<64x64xf32>, vector<32x64xf32> -> vector<32x64xf32>
    %c0_31 = arith.constant 0 : index
    %c0_32 = arith.constant 0 : index
    %35 = vector.load %arg12[%c0_31, %c0_32] : memref<64x64xf32, #tpu.memory_space<vmem>>, vector<64x64xf32>
    %cst_33 = arith.constant dense<0.000000e+00> : vector<32x64xf32>
    %36 = tpu.matmul %30, %35, %cst_33 {dimension_numbers = #tpu.dot_dimension_numbers<[1], [0], [0], [1], [0, 0, 1, 1], [], []>} : vector<32x64xf32>, vector<64x64xf32>, vector<32x64xf32> -> vector<32x64xf32>
    %c0_34 = arith.constant 0 : index
    %c0_35 = arith.constant 0 : index
    %37 = vector.load %arg13[%c0_34, %c0_35] : memref<64x4xf32, #tpu.memory_space<vmem>>, vector<64x4xf32>
    %c0_36 = arith.constant 0 : index
    %c0_37 = arith.constant 0 : index
    %38 = vector.load %arg14[%c0_36, %c0_37] : memref<4x64xf32, #tpu.memory_space<vmem>>, vector<4x64xf32>
    %c0_38 = arith.constant 0 : index
    %c0_39 = arith.constant 0 : index
    %39 = vector.load %arg15[%c0_38, %c0_39] : memref<64x16xf32, #tpu.memory_space<vmem>>, vector<64x16xf32>
    %40 = vector.extract_strided_slice %32 {offsets = [0, 0], sizes = [32, 16], strides = [1, 1]} : vector<32x64xf32> to vector<32x16xf32>
    %41 = tpu.concatenate %40, %40, %40, %40 in 1 : vector<32x16xf32>, vector<32x16xf32>, vector<32x16xf32>, vector<32x16xf32> -> vector<32x64xf32>
    %42 = arith.mulf %41, %34 : vector<32x64xf32>
    %cst_40 = arith.constant dense<0.000000e+00> : vector<32x4xf32>
    %43 = tpu.matmul %42, %37, %cst_40 {dimension_numbers = #tpu.dot_dimension_numbers<[1], [0], [0], [1], [0, 0, 1, 1], [], []>} : vector<32x64xf32>, vector<64x4xf32>, vector<32x4xf32> -> vector<32x4xf32>
    %cst_41 = arith.constant dense<0xFF800000> : vector<32xf32>
    %44 = vector.multi_reduction <maximumf>, %43, %cst_41 [1] : vector<32x4xf32> to vector<32xf32>
    %45 = vector.shape_cast %44 : vector<32xf32> to vector<32x1xf32>
    %46 = vector.broadcast %45 : vector<32x1xf32> to vector<32x4xf32>
    %47 = arith.subf %43, %46 : vector<32x4xf32>
    %48 = math.exp %47 : vector<32x4xf32>
    %cst_42 = arith.constant dense<0.000000e+00> : vector<32xf32>
    %49 = vector.multi_reduction <add>, %48, %cst_42 [1] : vector<32x4xf32> to vector<32xf32>
    %50 = vector.shape_cast %49 : vector<32xf32> to vector<32x1xf32>
    %51 = vector.broadcast %50 : vector<32x1xf32> to vector<32x4xf32>
    %52 = arith.divf %48, %51 : vector<32x4xf32>
    %cst_43 = arith.constant dense<0.000000e+00> : vector<32x64xf32>
    %53 = tpu.matmul %52, %38, %cst_43 {dimension_numbers = #tpu.dot_dimension_numbers<[1], [0], [0], [1], [0, 0, 1, 1], [], []>} : vector<32x4xf32>, vector<4x64xf32>, vector<32x64xf32> -> vector<32x64xf32>
    %54 = arith.mulf %53, %36 : vector<32x64xf32>
    %cst_44 = arith.constant dense<0.000000e+00> : vector<32x16xf32>
    %55 = tpu.matmul %54, %39, %cst_44 {dimension_numbers = #tpu.dot_dimension_numbers<[1], [0], [0], [1], [0, 0, 1, 1], [], []>} : vector<32x64xf32>, vector<64x16xf32>, vector<32x16xf32> -> vector<32x16xf32>
    %56 = vector.extract_strided_slice %32 {offsets = [0, 16], sizes = [32, 16], strides = [1, 1]} : vector<32x64xf32> to vector<32x16xf32>
    %57 = tpu.concatenate %56, %56, %56, %56 in 1 : vector<32x16xf32>, vector<32x16xf32>, vector<32x16xf32>, vector<32x16xf32> -> vector<32x64xf32>
    %58 = arith.mulf %57, %34 : vector<32x64xf32>
    %cst_45 = arith.constant dense<0.000000e+00> : vector<32x4xf32>
    %59 = tpu.matmul %58, %37, %cst_45 {dimension_numbers = #tpu.dot_dimension_numbers<[1], [0], [0], [1], [0, 0, 1, 1], [], []>} : vector<32x64xf32>, vector<64x4xf32>, vector<32x4xf32> -> vector<32x4xf32>
    %cst_46 = arith.constant dense<0xFF800000> : vector<32xf32>
    %60 = vector.multi_reduction <maximumf>, %59, %cst_46 [1] : vector<32x4xf32> to vector<32xf32>
    %61 = vector.shape_cast %60 : vector<32xf32> to vector<32x1xf32>
    %62 = vector.broadcast %61 : vector<32x1xf32> to vector<32x4xf32>
    %63 = arith.subf %59, %62 : vector<32x4xf32>
    %64 = math.exp %63 : vector<32x4xf32>
    %cst_47 = arith.constant dense<0.000000e+00> : vector<32xf32>
    %65 = vector.multi_reduction <add>, %64, %cst_47 [1] : vector<32x4xf32> to vector<32xf32>
    %66 = vector.shape_cast %65 : vector<32xf32> to vector<32x1xf32>
    %67 = vector.broadcast %66 : vector<32x1xf32> to vector<32x4xf32>
    %68 = arith.divf %64, %67 : vector<32x4xf32>
    %cst_48 = arith.constant dense<0.000000e+00> : vector<32x64xf32>
    %69 = tpu.matmul %68, %38, %cst_48 {dimension_numbers = #tpu.dot_dimension_numbers<[1], [0], [0], [1], [0, 0, 1, 1], [], []>} : vector<32x4xf32>, vector<4x64xf32>, vector<32x64xf32> -> vector<32x64xf32>
    %70 = arith.mulf %69, %36 : vector<32x64xf32>
    %cst_49 = arith.constant dense<0.000000e+00> : vector<32x16xf32>
    %71 = tpu.matmul %70, %39, %cst_49 {dimension_numbers = #tpu.dot_dimension_numbers<[1], [0], [0], [1], [0, 0, 1, 1], [], []>} : vector<32x64xf32>, vector<64x16xf32>, vector<32x16xf32> -> vector<32x16xf32>
    %72 = vector.extract_strided_slice %32 {offsets = [0, 32], sizes = [32, 16], strides = [1, 1]} : vector<32x64xf32> to vector<32x16xf32>
    %73 = tpu.concatenate %72, %72, %72, %72 in 1 : vector<32x16xf32>, vector<32x16xf32>, vector<32x16xf32>, vector<32x16xf32> -> vector<32x64xf32>
    %74 = arith.mulf %73, %34 : vector<32x64xf32>
    %cst_50 = arith.constant dense<0.000000e+00> : vector<32x4xf32>
    %75 = tpu.matmul %74, %37, %cst_50 {dimension_numbers = #tpu.dot_dimension_numbers<[1], [0], [0], [1], [0, 0, 1, 1], [], []>} : vector<32x64xf32>, vector<64x4xf32>, vector<32x4xf32> -> vector<32x4xf32>
    %cst_51 = arith.constant dense<0xFF800000> : vector<32xf32>
    %76 = vector.multi_reduction <maximumf>, %75, %cst_51 [1] : vector<32x4xf32> to vector<32xf32>
    %77 = vector.shape_cast %76 : vector<32xf32> to vector<32x1xf32>
    %78 = vector.broadcast %77 : vector<32x1xf32> to vector<32x4xf32>
    %79 = arith.subf %75, %78 : vector<32x4xf32>
    %80 = math.exp %79 : vector<32x4xf32>
    %cst_52 = arith.constant dense<0.000000e+00> : vector<32xf32>
    %81 = vector.multi_reduction <add>, %80, %cst_52 [1] : vector<32x4xf32> to vector<32xf32>
    %82 = vector.shape_cast %81 : vector<32xf32> to vector<32x1xf32>
    %83 = vector.broadcast %82 : vector<32x1xf32> to vector<32x4xf32>
    %84 = arith.divf %80, %83 : vector<32x4xf32>
    %cst_53 = arith.constant dense<0.000000e+00> : vector<32x64xf32>
    %85 = tpu.matmul %84, %38, %cst_53 {dimension_numbers = #tpu.dot_dimension_numbers<[1], [0], [0], [1], [0, 0, 1, 1], [], []>} : vector<32x4xf32>, vector<4x64xf32>, vector<32x64xf32> -> vector<32x64xf32>
    %86 = arith.mulf %85, %36 : vector<32x64xf32>
    %cst_54 = arith.constant dense<0.000000e+00> : vector<32x16xf32>
    %87 = tpu.matmul %86, %39, %cst_54 {dimension_numbers = #tpu.dot_dimension_numbers<[1], [0], [0], [1], [0, 0, 1, 1], [], []>} : vector<32x64xf32>, vector<64x16xf32>, vector<32x16xf32> -> vector<32x16xf32>
    %88 = vector.extract_strided_slice %32 {offsets = [0, 48], sizes = [32, 16], strides = [1, 1]} : vector<32x64xf32> to vector<32x16xf32>
    %89 = tpu.concatenate %88, %88, %88, %88 in 1 : vector<32x16xf32>, vector<32x16xf32>, vector<32x16xf32>, vector<32x16xf32> -> vector<32x64xf32>
    %90 = arith.mulf %89, %34 : vector<32x64xf32>
    %cst_55 = arith.constant dense<0.000000e+00> : vector<32x4xf32>
    %91 = tpu.matmul %90, %37, %cst_55 {dimension_numbers = #tpu.dot_dimension_numbers<[1], [0], [0], [1], [0, 0, 1, 1], [], []>} : vector<32x64xf32>, vector<64x4xf32>, vector<32x4xf32> -> vector<32x4xf32>
    %cst_56 = arith.constant dense<0xFF800000> : vector<32xf32>
    %92 = vector.multi_reduction <maximumf>, %91, %cst_56 [1] : vector<32x4xf32> to vector<32xf32>
    %93 = vector.shape_cast %92 : vector<32xf32> to vector<32x1xf32>
    %94 = vector.broadcast %93 : vector<32x1xf32> to vector<32x4xf32>
    %95 = arith.subf %91, %94 : vector<32x4xf32>
    %96 = math.exp %95 : vector<32x4xf32>
    %cst_57 = arith.constant dense<0.000000e+00> : vector<32xf32>
    %97 = vector.multi_reduction <add>, %96, %cst_57 [1] : vector<32x4xf32> to vector<32xf32>
    %98 = vector.shape_cast %97 : vector<32xf32> to vector<32x1xf32>
    %99 = vector.broadcast %98 : vector<32x1xf32> to vector<32x4xf32>
    %100 = arith.divf %96, %99 : vector<32x4xf32>
    %cst_58 = arith.constant dense<0.000000e+00> : vector<32x64xf32>
    %101 = tpu.matmul %100, %38, %cst_58 {dimension_numbers = #tpu.dot_dimension_numbers<[1], [0], [0], [1], [0, 0, 1, 1], [], []>} : vector<32x4xf32>, vector<4x64xf32>, vector<32x64xf32> -> vector<32x64xf32>
    %102 = arith.mulf %101, %36 : vector<32x64xf32>
    %cst_59 = arith.constant dense<0.000000e+00> : vector<32x16xf32>
    %103 = tpu.matmul %102, %39, %cst_59 {dimension_numbers = #tpu.dot_dimension_numbers<[1], [0], [0], [1], [0, 0, 1, 1], [], []>} : vector<32x64xf32>, vector<64x16xf32>, vector<32x16xf32> -> vector<32x16xf32>
    %104 = tpu.concatenate %55, %71, %87, %103 in 1 : vector<32x16xf32>, vector<32x16xf32>, vector<32x16xf32>, vector<32x16xf32> -> vector<32x64xf32>
    %c0_60 = arith.constant 0 : index
    %c0_61 = arith.constant 0 : index
    %105 = vector.load %arg16[%c0_60, %c0_61] : memref<64x256xf32, #tpu.memory_space<vmem>>, vector<64x256xf32>
    %cst_62 = arith.constant dense<0.000000e+00> : vector<32x256xf32>
    %106 = tpu.matmul %104, %105, %cst_62 {dimension_numbers = #tpu.dot_dimension_numbers<[1], [0], [0], [1], [0, 0, 1, 1], [], []>} : vector<32x64xf32>, vector<64x256xf32>, vector<32x256xf32> -> vector<32x256xf32>
    %c0_63 = arith.constant 0 : index
    %c0_64 = arith.constant 0 : index
    %107 = vector.load %arg17[%c0_63, %c0_64] : memref<1x256xf32, #tpu.memory_space<vmem>>, vector<1x256xf32>
    %108 = vector.broadcast %107 : vector<1x256xf32> to vector<32x256xf32>
    %109 = arith.addf %106, %108 : vector<32x256xf32>
    %cst_65 = arith.constant 0.000000e+00 : f32
    %110 = vector.broadcast %cst_65 : f32 to vector<32x256xf32>
    %111 = arith.maximumf %109, %110 : vector<32x256xf32>
    %c0_66 = arith.constant 0 : index
    %c0_67 = arith.constant 0 : index
    %112 = vector.load %arg18[%c0_66, %c0_67] : memref<256x16xf32, #tpu.memory_space<vmem>>, vector<256x16xf32>
    %cst_68 = arith.constant dense<0.000000e+00> : vector<32x16xf32>
    %113 = tpu.matmul %111, %112, %cst_68 {dimension_numbers = #tpu.dot_dimension_numbers<[1], [0], [0], [1], [0, 0, 1, 1], [], []>} : vector<32x256xf32>, vector<256x16xf32>, vector<32x16xf32> -> vector<32x16xf32>
    %c0_69 = arith.constant 0 : index
    %c0_70 = arith.constant 0 : index
    %114 = vector.load %arg19[%c0_69, %c0_70] : memref<1x16xf32, #tpu.memory_space<vmem>>, vector<1x16xf32>
    %115 = vector.broadcast %114 : vector<1x16xf32> to vector<32x16xf32>
    %116 = arith.addf %113, %115 : vector<32x16xf32>
    %c0_71 = arith.constant 0 : index
    %c0_72 = arith.constant 0 : index
    %117 = vector.load %arg20[%c0_71, %c0_72] : memref<32x16xf32, #tpu.memory_space<vmem>>, vector<32x16xf32>
    tpu.vector_store %arg20[%c0_71, %c0_72], %116 {strides = array<i32>} : memref<32x16xf32, #tpu.memory_space<vmem>>, vector<32x16xf32>,
    return
  }
}

</mosaic_0001>

<llo_original>
// kernel: encoder_forward.1
$region0: #{encoder_forward.1}
  #allocation0 [shape = 'u32[]', space=smem, size = 0x4, offset = 0x4, fixed_abs, tag = 'smem constant byte address 0x4 - core index']
  #allocation1 [shape = 'u32[144,128]{1,0:T(1,128)}', space=vmem, size = 0x12000, scoped, tag = 'internal scratch']
  %s0 = inlined_call_operand.vmem [shape: f32[32,128], index: 0, kind: input, shape index: {}]
  %s1 = inlined_call_operand.vmem [shape: f32[128,32], index: 1, kind: input, shape index: {}]
  %s2 = inlined_call_operand.vmem [shape: f32[32,64], index: 2, kind: input, shape index: {}]
  %s3 = inlined_call_operand.vmem [shape: f32[1,64], index: 3, kind: input, shape index: {}]
  %s4 = inlined_call_operand.vmem [shape: f32[32,64], index: 4, kind: input, shape index: {}]
  %s5 = inlined_call_operand.vmem [shape: f32[1,64], index: 5, kind: input, shape index: {}]
  %s6 = inlined_call_operand.vmem [shape: f32[64,64], index: 6, kind: input, shape index: {}]
  %s7 = inlined_call_operand.vmem [shape: f32[1,64], index: 7, kind: input, shape index: {}]
  %s8 = inlined_call_operand.vmem [shape: f32[64,64], index: 8, kind: input, shape index: {}]
  %s9 = inlined_call_operand.vmem [shape: f32[1,64], index: 9, kind: input, shape index: {}]
  %s10 = inlined_call_operand.vmem [shape: f32[64,64], index: 10, kind: input, shape index: {}]
  %s11 = inlined_call_operand.vmem [shape: f32[64,64], index: 11, kind: input, shape index: {}]
  %s12 = inlined_call_operand.vmem [shape: f32[64,64], index: 12, kind: input, shape index: {}]
  %s13 = inlined_call_operand.vmem [shape: f32[64,4], index: 13, kind: input, shape index: {}]
  %s14 = inlined_call_operand.vmem [shape: f32[4,64], index: 14, kind: input, shape index: {}]
  %s15 = inlined_call_operand.vmem [shape: f32[64,16], index: 15, kind: input, shape index: {}]
  %s16 = inlined_call_operand.vmem [shape: f32[64,256], index: 16, kind: input, shape index: {}]
  %s17 = inlined_call_operand.vmem [shape: f32[1,256], index: 17, kind: input, shape index: {}]
  %s18 = inlined_call_operand.vmem [shape: f32[256,16], index: 18, kind: input, shape index: {}]
  %s19 = inlined_call_operand.vmem [shape: f32[1,16], index: 19, kind: input, shape index: {}]
  %s20 = inlined_call_operand.vmem [shape: f32[32,16], index: 20, kind: output, shape index: {}]
  %s21 = sld [smem:[#allocation0]]
  $region90: #{encoder_forward.1} parent=0
    _
  %s23 = ssub.s32 1, %s21
  %s24 = scalar_select 0, %s23, %s21
  // Predicated region
  $region2: #{encoder_forward.1} parent=0 // pred_check
    _
  $region3: #{encoder_forward.1} parent=0 // pred_check_branch
    %26 = sbr.rel (0) target = $region5
  $region4: #{encoder_forward.1} parent=0 // pred_region
    _
  $region5: #{encoder_forward.1} parent=0 // pred_fallthru
    _
  // Predicated region
  $region6: #{encoder_forward.1} parent=0 // pred_check
    _
  $region7: #{encoder_forward.1} parent=0 // pred_check_branch
    %28 = sbr.rel (0) target = $region9
  $region8: #{encoder_forward.1} parent=0 // pred_region
    _
  $region9: #{encoder_forward.1} parent=0 // pred_fallthru
    _
  // Predicated region
  $region10: #{encoder_forward.1} parent=0 // pred_check
    _
  $region11: #{encoder_forward.1} parent=0 // pred_check_branch
    %30 = sbr.rel (0) target = $region13
  $region12: #{encoder_forward.1} parent=0 // pred_region
    _
  $region13: #{encoder_forward.1} parent=0 // pred_fallthru
    _
  // Predicated region
  $region14: #{encoder_forward.1} parent=0 // pred_check
    _
  $region15: #{encoder_forward.1} parent=0 // pred_check_branch
    %32 = sbr.rel (0) target = $region17
  $region16: #{encoder_forward.1} parent=0 // pred_region
    _
  $region17: #{encoder_forward.1} parent=0 // pred_fallthru
    _
  // Predicated region
  $region18: #{encoder_forward.1} parent=0 // pred_check
    _
  $region19: #{encoder_forward.1} parent=0 // pred_check_branch
    %34 = sbr.rel (0) target = $region21
  $region20: #{encoder_forward.1} parent=0 // pred_region
    _
  $region21: #{encoder_forward.1} parent=0 // pred_fallthru
    _
  // Predicated region
  $region22: #{encoder_forward.1} parent=0 // pred_check
    _
  $region23: #{encoder_forward.1} parent=0 // pred_check_branch
    %36 = sbr.rel (0) target = $region25
  $region24: #{encoder_forward.1} parent=0 // pred_region
    _
  $region25: #{encoder_forward.1} parent=0 // pred_fallthru
    _
  // Predicated region
  $region26: #{encoder_forward.1} parent=0 // pred_check
    _
  $region27: #{encoder_forward.1} parent=0 // pred_check_branch
    %38 = sbr.rel (0) target = $region29
  $region28: #{encoder_forward.1} parent=0 // pred_region
    _
  $region29: #{encoder_forward.1} parent=0 // pred_fallthru
    _
  // Predicated region
  $region30: #{encoder_forward.1} parent=0 // pred_check
    _
  $region31: #{encoder_forward.1} parent=0 // pred_check_branch
    %40 = sbr.rel (0) target = $region33
  $region32: #{encoder_forward.1} parent=0 // pred_region
    _
  $region33: #{encoder_forward.1} parent=0 // pred_fallthru
    _
  // Predicated region
  $region34: #{encoder_forward.1} parent=0 // pred_check
    _
  $region35: #{encoder_forward.1} parent=0 // pred_check_branch
    %42 = sbr.rel (0) target = $region37
  $region36: #{encoder_forward.1} parent=0 // pred_region
    _
  $region37: #{encoder_forward.1} parent=0 // pred_fallthru
    _
  // Predicated region
  $region38: #{encoder_forward.1} parent=0 // pred_check
    _
  $region39: #{encoder_forward.1} parent=0 // pred_check_branch
    %44 = sbr.rel (0) target = $region41
  $region40: #{encoder_forward.1} parent=0 // pred_region
    _
  $region41: #{encoder_forward.1} parent=0 // pred_fallthru
    _
  // Predicated region
  $region42: #{encoder_forward.1} parent=0 // pred_check
    _
  $region43: #{encoder_forward.1} parent=0 // pred_check_branch
    %46 = sbr.rel (0) target = $region45
  $region44: #{encoder_forward.1} parent=0 // pred_region
    _
  $region45: #{encoder_forward.1} parent=0 // pred_fallthru
    _
  // Predicated region
  $region46: #{encoder_forward.1} parent=0 // pred_check
    _
  $region47: #{encoder_forward.1} parent=0 // pred_check_branch
    %48 = sbr.rel (0) target = $region49
  $region48: #{encoder_forward.1} parent=0 // pred_region
    _
  $region49: #{encoder_forward.1} parent=0 // pred_fallthru
    _
  // Predicated region
  $region50: #{encoder_forward.1} parent=0 // pred_check
    _
  $region51: #{encoder_forward.1} parent=0 // pred_check_branch
    %50 = sbr.rel (0) target = $region53
  $region52: #{encoder_forward.1} parent=0 // pred_region
    _
  $region53: #{encoder_forward.1} parent=0 // pred_fallthru
    _
  // Predicated region
  $region54: #{encoder_forward.1} parent=0 // pred_check
    _
  $region55: #{encoder_forward.1} parent=0 // pred_check_branch
    %52 = sbr.rel (0) target = $region57
  $region56: #{encoder_forward.1} parent=0 // pred_region
    _
  $region57: #{encoder_forward.1} parent=0 // pred_fallthru
    _
  // Predicated region
  $region58: #{encoder_forward.1} parent=0 // pred_check
    _
  $region59: #{encoder_forward.1} parent=0 // pred_check_branch
    %54 = sbr.rel (0) target = $region61
  $region60: #{encoder_forward.1} parent=0 // pred_region
    _
  $region61: #{encoder_forward.1} parent=0 // pred_fallthru
    _
  // Predicated region
  $region62: #{encoder_forward.1} parent=0 // pred_check
    _
  $region63: #{encoder_forward.1} parent=0 // pred_check_branch
    %56 = sbr.rel (0) target = $region65
  $region64: #{encoder_forward.1} parent=0 // pred_region
    _
  $region65: #{encoder_forward.1} parent=0 // pred_fallthru
    _
  // Predicated region
  $region66: #{encoder_forward.1} parent=0 // pred_check
    _
  $region67: #{encoder_forward.1} parent=0 // pred_check_branch
    %58 = sbr.rel (0) target = $region69
  $region68: #{encoder_forward.1} parent=0 // pred_region
    _
  $region69: #{encoder_forward.1} parent=0 // pred_fallthru
    _
  // Predicated region
  $region70: #{encoder_forward.1} parent=0 // pred_check
    _
  $region71: #{encoder_forward.1} parent=0 // pred_check_branch
    %60 = sbr.rel (0) target = $region73
  $region72: #{encoder_forward.1} parent=0 // pred_region
    _
  $region73: #{encoder_forward.1} parent=0 // pred_fallthru
    _
  // Predicated region
  $region74: #{encoder_forward.1} parent=0 // pred_check
    _
  $region75: #{encoder_forward.1} parent=0 // pred_check_branch
    %62 = sbr.rel (0) target = $region77
  $region76: #{encoder_forward.1} parent=0 // pred_region
    _
  $region77: #{encoder_forward.1} parent=0 // pred_fallthru
    _
  // Predicated region
  $region78: #{encoder_forward.1} parent=0 // pred_check
    _
  $region79: #{encoder_forward.1} parent=0 // pred_check_branch
    %64 = sbr.rel (0) target = $region81
  $region80: #{encoder_forward.1} parent=0 // pred_region
    _
  $region81: #{encoder_forward.1} parent=0 // pred_fallthru
    _
  %v65 = vld [vmem:[%s0] sm:$0xff]
  %v66 = vld [vmem:[%s0 + $0x8] sm:$0xff]
  %v67 = vld [vmem:[%s0 + $0x10] sm:$0xff]
  %v68 = vld [vmem:[%s0 + $0x18] sm:$0xff]
  %v69 = vld [vmem:[%s1] sm:$0xff]
  %v70 = vld [vmem:[%s1 + $0x8] sm:$0xff]
  %v71 = vld [vmem:[%s1 + $0x10] sm:$0xff]
  %v72 = vld [vmem:[%s1 + $0x18] sm:$0xff]
  %v73 = vld [vmem:[%s1 + $0x20] sm:$0xff]
  %v74 = vld [vmem:[%s1 + $0x28] sm:$0xff]
  %v75 = vld [vmem:[%s1 + $0x30] sm:$0xff]
  %v76 = vld [vmem:[%s1 + $0x38] sm:$0xff]
  %v77 = vld [vmem:[%s1 + $0x40] sm:$0xff]
  %v78 = vld [vmem:[%s1 + $0x48] sm:$0xff]
  %v79 = vld [vmem:[%s1 + $0x50] sm:$0xff]
  %v80 = vld [vmem:[%s1 + $0x58] sm:$0xff]
  %v81 = vld [vmem:[%s1 + $0x60] sm:$0xff]
  %v82 = vld [vmem:[%s1 + $0x68] sm:$0xff]
  %v83 = vld [vmem:[%s1 + $0x70] sm:$0xff]
  %v84 = vld [vmem:[%s1 + $0x78] sm:$0xff]
  %85 = vmatprep.subr.mxu0 0.0
  %86 = vmatpush1.msra.mxu0 %v69
  %87 = vmatprep.subr.mxu0 0.0
  %88 = vmatpush1.msra.mxu0 %v70
  %89 = vmatprep.subr.mxu0 0.0
  %90 = vmatpush1.msra.mxu0 %v71
  %91 = vmatprep.subr.mxu0 0.0
  %92 = vmatpush1.msra.mxu0 %v72
  %93 = vmatprep.subr.mxu0 0.0
  %94 = vmatpush1.msra.mxu0 %v73
  %95 = vmatprep.subr.mxu0 0.0
  %96 = vmatpush1.msra.mxu0 %v74
  %97 = vmatprep.subr.mxu0 0.0
  %98 = vmatpush1.msra.mxu0 %v75
  %99 = vmatprep.subr.mxu0 0.0
  %100 = vmatpush1.msra.mxu0 %v76
  %101 = vmatprep.subr.mxu0 0.0
  %102 = vmatpush1.msra.mxu0 %v77
  %103 = vmatprep.subr.mxu0 0.0
  %104 = vmatpush1.msra.mxu0 %v78
  %105 = vmatprep.subr.mxu0 0.0
  %106 = vmatpush1.msra.mxu0 %v79
  %107 = vmatprep.subr.mxu0 0.0
  %108 = vmatpush1.msra.mxu0 %v80
  %109 = vmatprep.subr.mxu0 0.0
  %110 = vmatpush1.msra.mxu0 %v81
  %111 = vmatprep.subr.mxu0 0.0
  %112 = vmatpush1.msra.mxu0 %v82
  %113 = vmatprep.subr.mxu0 0.0
  %114 = vmatpush1.msra.mxu0 %v83
  %115 = vmatprep.subr.mxu0 0.0
  %116 = vmatpush1.msra.mxu0 %v84
  %117 = vmatprep.subr.mxu0 0.0
  %118 = vmatpush1.msra.mxu0 0.0
  %119 = vmatprep.subr.mxu0 0.0
  %120 = vmatpush1.msra.mxu0 0.0
  %121 = vmatprep.subr.mxu0 0.0
  %122 = vmatpush1.msra.mxu0 0.0
  %123 = vmatprep.subr.mxu0 0.0
  %124 = vmatpush1.msra.mxu0 0.0
  %125 = vmatprep.subr.mxu0 0.0
  %126 = vmatpush1.msra.mxu0 0.0
  %127 = vmatprep.subr.mxu0 0.0
  %128 = vmatpush1.msra.mxu0 0.0
  %129 = vmatprep.subr.mxu0 0.0
  %130 = vmatpush1.msra.mxu0 0.0
  %131 = vmatprep.subr.mxu0 0.0
  %132 = vmatpush1.msra.mxu0 0.0
  %133 = vmatprep.subr.mxu0 0.0
  %134 = vmatpush1.msra.mxu0 0.0
  %135 = vmatprep.subr.mxu0 0.0
  %136 = vmatpush1.msra.mxu0 0.0
  %137 = vmatprep.subr.mxu0 0.0
  %138 = vmatpush1.msra.mxu0 0.0
  %139 = vmatprep.subr.mxu0 0.0
  %140 = vmatpush1.msra.mxu0 0.0
  %141 = vmatprep.subr.mxu0 0.0
  %142 = vmatpush1.msra.mxu0 0.0
  %143 = vmatprep.subr.mxu0 0.0
  %144 = vmatpush1.msra.mxu0 0.0
  %145 = vmatprep.subr.mxu0 0.0
  %146 = vmatpush1.msra.mxu0 0.0
  %147 = vmatprep.subr.mxu0 0.0
  %148 = vmatpush1.msra.mxu0 0.0
  %149 = vmatprep.mubr.f32.mxu0 0.0
  %150 = vmatmul.mubr.f32.gmra.mrb[0].mxu0 %v65
  %v151 = vpop.f32.mrb[0].mxu0
  %v152 = vadd.f32 0.0, %v151
  %v153 = vpop.f32.mrb[0].mxu0
  %154 = vmatprep.mubr.f32.mxu0 0.0
  %155 = vmatmul.mubr.f32.gmra.mrb[0].mxu0 %v66
  %v156 = vpop.f32.mrb[0].mxu0
  %v157 = vadd.f32 0.0, %v156
  %v158 = vpop.f32.mrb[0].mxu0
  %159 = vmatprep.mubr.f32.mxu0 0.0
  %160 = vmatmul.mubr.f32.gmra.mrb[0].mxu0 %v67
  %v161 = vpop.f32.mrb[0].mxu0
  %v162 = vadd.f32 0.0, %v161
  %v163 = vpop.f32.mrb[0].mxu0
  %164 = vmatprep.mubr.f32.mxu0 0.0
  %165 = vmatmul.mubr.f32.gmra.mrb[0].mxu0 %v68
  %v166 = vpop.f32.mrb[0].mxu0
  %v167 = vadd.f32 0.0, %v166
  %v168 = vpop.f32.mrb[0].mxu0
  %169 = vdwg.mxu0
  %v170 = vld [vmem:[%s2] sm:$0xff]
  %v171 = vld [vmem:[%s2 + $0x8] sm:$0xff]
  %v172 = vld [vmem:[%s2 + $0x10] sm:$0xff]
  %v173 = vld [vmem:[%s2 + $0x18] sm:$0xff]
  %v174 = vld [vmem:[%s3] sm:$0x1]
  %v176 = vlaneseq
  %v177 = vshrl.u32 %v176, 7
  %v178 = vsub.s32 0, %v177
  %v179 = vrot.slane %v174, %v178
  %vm181 = vcmask 261120
  %v183 = vsel %vm181, %v152, 0
  %v186 = vsel %vm181, %v157, 0
  %188 = vmatprep.subr.mxu0 0.0
  %189 = vmatpush1.msra.mxu0 %v170
  %190 = vmatprep.subr.mxu0 0.0
  %191 = vmatpush1.msra.mxu0 %v171
  %192 = vmatprep.subr.mxu0 0.0
  %193 = vmatpush1.msra.mxu0 %v172
  %194 = vmatprep.subr.mxu0 0.0
  %195 = vmatpush1.msra.mxu0 %v173
  %196 = vmatprep.subr.mxu0 0.0
  %197 = vmatpush1.msra.mxu0 0.0
  %198 = vmatprep.subr.mxu0 0.0
  %199 = vmatpush1.msra.mxu0 0.0
  %200 = vmatprep.subr.mxu0 0.0
  %201 = vmatpush1.msra.mxu0 0.0
  %202 = vmatprep.subr.mxu0 0.0
  %203 = vmatpush1.msra.mxu0 0.0
  %204 = vmatprep.subr.mxu0 0.0
  %205 = vmatpush1.msra.mxu0 0.0
  %206 = vmatprep.subr.mxu0 0.0
  %207 = vmatpush1.msra.mxu0 0.0
  %208 = vmatprep.subr.mxu0 0.0
  %209 = vmatpush1.msra.mxu0 0.0
  %210 = vmatprep.subr.mxu0 0.0
  %211 = vmatpush1.msra.mxu0 0.0
  %212 = vmatprep.subr.mxu0 0.0
  %213 = vmatpush1.msra.mxu0 0.0
  %214 = vmatprep.subr.mxu0 0.0
  %215 = vmatpush1.msra.mxu0 0.0
  %216 = vmatprep.subr.mxu0 0.0
  %217 = vmatpush1.msra.mxu0 0.0
  %218 = vmatprep.subr.mxu0 0.0
  %219 = vmatpush1.msra.mxu0 0.0
  %220 = vmatprep.subr.mxu0 0.0
  %221 = vmatpush1.msra.mxu0 0.0
  %222 = vmatprep.subr.mxu0 0.0
  %223 = vmatpush1.msra.mxu0 0.0
  %224 = vmatprep.subr.mxu0 0.0
  %225 = vmatpush1.msra.mxu0 0.0
  %226 = vmatprep.subr.mxu0 0.0
  %227 = vmatpush1.msra.mxu0 0.0
  %228 = vmatprep.subr.mxu0 0.0
  %229 = vmatpush1.msra.mxu0 0.0
  %230 = vmatprep.subr.mxu0 0.0
  %231 = vmatpush1.msra.mxu0 0.0
  %232 = vmatprep.subr.mxu0 0.0
  %233 = vmatpush1.msra.mxu0 0.0
  %234 = vmatprep.subr.mxu0 0.0
  %235 = vmatpush1.msra.mxu0 0.0
  %236 = vmatprep.subr.mxu0 0.0
  %237 = vmatpush1.msra.mxu0 0.0
  %238 = vmatprep.subr.mxu0 0.0
  %239 = vmatpush1.msra.mxu0 0.0
  %240 = vmatprep.subr.mxu0 0.0
  %241 = vmatpush1.msra.mxu0 0.0
  %242 = vmatprep.subr.mxu0 0.0
  %243 = vmatpush1.msra.mxu0 0.0
  %244 = vmatprep.subr.mxu0 0.0
  %245 = vmatpush1.msra.mxu0 0.0
  %246 = vmatprep.subr.mxu0 0.0
  %247 = vmatpush1.msra.mxu0 0.0
  %248 = vmatprep.subr.mxu0 0.0
  %249 = vmatpush1.msra.mxu0 0.0
  %250 = vmatprep.subr.mxu0 0.0
  %251 = vmatpush1.msra.mxu0 0.0
  %252 = vmatprep.mubr.f32.mxu0 0.0
  %253 = vmatmul.mubr.f32.gmra.mrb[0].mxu0 %v183
  %v254 = vpop.f32.mrb[0].mxu0
  %v255 = vadd.f32 %v179, %v254
  %v256 = vpop.f32.mrb[0].mxu0
  %257 = vmatprep.mubr.f32.mxu0 0.0
  %258 = vmatmul.mubr.f32.gmra.mrb[0].mxu0 %v186
  %v259 = vpop.f32.mrb[0].mxu0
  %v260 = vadd.f32 %v179, %v259
  %v261 = vpop.f32.mrb[0].mxu0
  %262 = vdwg.mxu0
  %v263 = vmax.f32 %v255, 0.0
  %v264 = vmax.f32 %v260, 0.0
  %v265 = vld [vmem:[%s4] sm:$0xff]
  %v266 = vld [vmem:[%s4 + $0x8] sm:$0xff]
  %v267 = vld [vmem:[%s4 + $0x10] sm:$0xff]
  %v268 = vld [vmem:[%s4 + $0x18] sm:$0xff]
  %v269 = vld [vmem:[%s5] sm:$0x1]
  %v271 = vlaneseq
  %v272 = vshrl.u32 %v271, 7
  %v273 = vsub.s32 0, %v272
  %v274 = vrot.slane %v269, %v273
  %v277 = vsel %vm181, %v162, 0
  %v280 = vsel %vm181, %v167, 0
  %282 = vmatprep.subr.mxu0 0.0
  %283 = vmatpush1.msra.mxu0 %v265
  %284 = vmatprep.subr.mxu0 0.0
  %285 = vmatpush1.msra.mxu0 %v266
  %286 = vmatprep.subr.mxu0 0.0
  %287 = vmatpush1.msra.mxu0 %v267
  %288 = vmatprep.subr.mxu0 0.0
  %289 = vmatpush1.msra.mxu0 %v268
  %290 = vmatprep.subr.mxu0 0.0
  %291 = vmatpush1.msra.mxu0 0.0
  %292 = vmatprep.subr.mxu0 0.0
  %293 = vmatpush1.msra.mxu0 0.0
  %294 = vmatprep.subr.mxu0 0.0
  %295 = vmatpush1.msra.mxu0 0.0
  %296 = vmatprep.subr.mxu0 0.0
  %297 = vmatpush1.msra.mxu0 0.0
  %298 = vmatprep.subr.mxu0 0.0
  %299 = vmatpush1.msra.mxu0 0.0
  %300 = vmatprep.subr.mxu0 0.0
  %301 = vmatpush1.msra.mxu0 0.0
  %302 = vmatprep.subr.mxu0 0.0
  %303 = vmatpush1.msra.mxu0 0.0
  %304 = vmatprep.subr.mxu0 0.0
  %305 = vmatpush1.msra.mxu0 0.0
  %306 = vmatprep.subr.mxu0 0.0
  %307 = vmatpush1.msra.mxu0 0.0
  %308 = vmatprep.subr.mxu0 0.0
  %309 = vmatpush1.msra.mxu0 0.0
  %310 = vmatprep.subr.mxu0 0.0
  %311 = vmatpush1.msra.mxu0 0.0
  %312 = vmatprep.subr.mxu0 0.0
  %313 = vmatpush1.msra.mxu0 0.0
  %314 = vmatprep.subr.mxu0 0.0
  %315 = vmatpush1.msra.mxu0 0.0
  %316 = vmatprep.subr.mxu0 0.0
  %317 = vmatpush1.msra.mxu0 0.0
  %318 = vmatprep.subr.mxu0 0.0
  %319 = vmatpush1.msra.mxu0 0.0
  %320 = vmatprep.subr.mxu0 0.0
  %321 = vmatpush1.msra.mxu0 0.0
  %322 = vmatprep.subr.mxu0 0.0
  %323 = vmatpush1.msra.mxu0 0.0
  %324 = vmatprep.subr.mxu0 0.0
  %325 = vmatpush1.msra.mxu0 0.0
  %326 = vmatprep.subr.mxu0 0.0
  %327 = vmatpush1.msra.mxu0 0.0
  %328 = vmatprep.subr.mxu0 0.0
  %329 = vmatpush1.msra.mxu0 0.0
  %330 = vmatprep.subr.mxu0 0.0
  %331 = vmatpush1.msra.mxu0 0.0
  %332 = vmatprep.subr.mxu0 0.0
  %333 = vmatpush1.msra.mxu0 0.0
  %334 = vmatprep.subr.mxu0 0.0
  %335 = vmatpush1.msra.mxu0 0.0
  %336 = vmatprep.subr.mxu0 0.0
  %337 = vmatpush1.msra.mxu0 0.0
  %338 = vmatprep.subr.mxu0 0.0
  %339 = vmatpush1.msra.mxu0 0.0
  %340 = vmatprep.subr.mxu0 0.0
  %341 = vmatpush1.msra.mxu0 0.0
  %342 = vmatprep.subr.mxu0 0.0
  %343 = vmatpush1.msra.mxu0 0.0
  %344 = vmatprep.subr.mxu0 0.0
  %345 = vmatpush1.msra.mxu0 0.0
  %346 = vmatprep.mubr.f32.mxu0 0.0
  %347 = vmatmul.mubr.f32.gmra.mrb[0].mxu0 %v277
  %v348 = vpop.f32.mrb[0].mxu0
  %v349 = vadd.f32 %v274, %v348
  %v350 = vpop.f32.mrb[0].mxu0
  %351 = vmatprep.mubr.f32.mxu0 0.0
  %352 = vmatmul.mubr.f32.gmra.mrb[0].mxu0 %v280
  %v353 = vpop.f32.mrb[0].mxu0
  %v354 = vadd.f32 %v274, %v353
  %v355 = vpop.f32.mrb[0].mxu0
  %356 = vdwg.mxu0
  %v357 = vmax.f32 %v349, 0.0
  %v358 = vmax.f32 %v354, 0.0
  %v359 = vld [vmem:[%s6] sm:$0xff]
  %v360 = vld [vmem:[%s6 + $0x8] sm:$0xff]
  %v361 = vld [vmem:[%s6 + $0x10] sm:$0xff]
  %v362 = vld [vmem:[%s6 + $0x18] sm:$0xff]
  %v363 = vld [vmem:[%s6 + $0x20] sm:$0xff]
  %v364 = vld [vmem:[%s6 + $0x28] sm:$0xff]
  %v365 = vld [vmem:[%s6 + $0x30] sm:$0xff]
  %v366 = vld [vmem:[%s6 + $0x38] sm:$0xff]
  %v367 = vld [vmem:[%s7] sm:$0x1]
  %v369 = vlaneseq
  %v370 = vshrl.u32 %v369, 7
  %v371 = vsub.s32 0, %v370
  %v372 = vrot.slane %v367, %v371
  %vm374 = vcmask 523264
  %v376 = vsel %vm374, %v263, 0
  %v379 = vsel %vm374, %v264, 0
  %381 = vmatprep.subr.mxu0 0.0
  %382 = vmatpush1.msra.mxu0 %v359
  %383 = vmatprep.subr.mxu0 0.0
  %384 = vmatpush1.msra.mxu0 %v360
  %385 = vmatprep.subr.mxu0 0.0
  %386 = vmatpush1.msra.mxu0 %v361
  %387 = vmatprep.subr.mxu0 0.0
  %388 = vmatpush1.msra.mxu0 %v362
  %389 = vmatprep.subr.mxu0 0.0
  %390 = vmatpush1.msra.mxu0 %v363
  %391 = vmatprep.subr.mxu0 0.0
  %392 = vmatpush1.msra.mxu0 %v364
  %393 = vmatprep.subr.mxu0 0.0
  %394 = vmatpush1.msra.mxu0 %v365
  %395 = vmatprep.subr.mxu0 0.0
  %396 = vmatpush1.msra.mxu0 %v366
  %397 = vmatprep.subr.mxu0 0.0
  %398 = vmatpush1.msra.mxu0 0.0
  %399 = vmatprep.subr.mxu0 0.0
  %400 = vmatpush1.msra.mxu0 0.0
  %401 = vmatprep.subr.mxu0 0.0
  %402 = vmatpush1.msra.mxu0 0.0
  %403 = vmatprep.subr.mxu0 0.0
  %404 = vmatpush1.msra.mxu0 0.0
  %405 = vmatprep.subr.mxu0 0.0
  %406 = vmatpush1.msra.mxu0 0.0
  %407 = vmatprep.subr.mxu0 0.0
  %408 = vmatpush1.msra.mxu0 0.0
  %409 = vmatprep.subr.mxu0 0.0
  %410 = vmatpush1.msra.mxu0 0.0
  %411 = vmatprep.subr.mxu0 0.0
  %412 = vmatpush1.msra.mxu0 0.0
  %413 = vmatprep.subr.mxu0 0.0
  %414 = vmatpush1.msra.mxu0 0.0
  %415 = vmatprep.subr.mxu0 0.0
  %416 = vmatpush1.msra.mxu0 0.0
  %417 = vmatprep.subr.mxu0 0.0
  %418 = vmatpush1.msra.mxu0 0.0
  %419 = vmatprep.subr.mxu0 0.0
  %420 = vmatpush1.msra.mxu0 0.0
  %421 = vmatprep.subr.mxu0 0.0
  %422 = vmatpush1.msra.mxu0 0.0
  %423 = vmatprep.subr.mxu0 0.0
  %424 = vmatpush1.msra.mxu0 0.0
  %425 = vmatprep.subr.mxu0 0.0
  %426 = vmatpush1.msra.mxu0 0.0
  %427 = vmatprep.subr.mxu0 0.0
  %428 = vmatpush1.msra.mxu0 0.0
  %429 = vmatprep.subr.mxu0 0.0
  %430 = vmatpush1.msra.mxu0 0.0
  %431 = vmatprep.subr.mxu0 0.0
  %432 = vmatpush1.msra.mxu0 0.0
  %433 = vmatprep.subr.mxu0 0.0
  %434 = vmatpush1.msra.mxu0 0.0
  %435 = vmatprep.subr.mxu0 0.0
  %436 = vmatpush1.msra.mxu0 0.0
  %437 = vmatprep.subr.mxu0 0.0
  %438 = vmatpush1.msra.mxu0 0.0
  %439 = vmatprep.subr.mxu0 0.0
  %440 = vmatpush1.msra.mxu0 0.0
  %441 = vmatprep.subr.mxu0 0.0
  %442 = vmatpush1.msra.mxu0 0.0
  %443 = vmatprep.subr.mxu0 0.0
  %444 = vmatpush1.msra.mxu0 0.0
  %445 = vmatprep.mubr.f32.mxu0 0.0
  %446 = vmatmul.mubr.f32.gmra.mrb[0].mxu0 %v376
  %v447 = vpop.f32.mrb[0].mxu0
  %v448 = vadd.f32 %v372, %v447
  %v449 = vpop.f32.mrb[0].mxu0
  %450 = vmatprep.mubr.f32.mxu0 0.0
  %451 = vmatmul.mubr.f32.gmra.mrb[0].mxu0 %v379
  %v452 = vpop.f32.mrb[0].mxu0
  %v453 = vadd.f32 %v372, %v452
  %v454 = vpop.f32.mrb[0].mxu0
  %455 = vdwg.mxu0
  %v456 = vld [vmem:[%s8] sm:$0xff]
  %v457 = vld [vmem:[%s8 + $0x8] sm:$0xff]
  %v458 = vld [vmem:[%s8 + $0x10] sm:$0xff]
  %v459 = vld [vmem:[%s8 + $0x18] sm:$0xff]
  %v460 = vld [vmem:[%s8 + $0x20] sm:$0xff]
  %v461 = vld [vmem:[%s8 + $0x28] sm:$0xff]
  %v462 = vld [vmem:[%s8 + $0x30] sm:$0xff]
  %v463 = vld [vmem:[%s8 + $0x38] sm:$0xff]
  %v464 = vld [vmem:[%s9] sm:$0x1]
  %v466 = vlaneseq
  %v467 = vshrl.u32 %v466, 7
  %v468 = vsub.s32 0, %v467
  %v469 = vrot.slane %v464, %v468
  %v472 = vsel %vm374, %v357, 0
  %v475 = vsel %vm374, %v358, 0
  %477 = vmatprep.subr.mxu0 0.0
  %478 = vmatpush1.msra.mxu0 %v456
  %479 = vmatprep.subr.mxu0 0.0
  %480 = vmatpush1.msra.mxu0 %v457
  %481 = vmatprep.subr.mxu0 0.0
  %482 = vmatpush1.msra.mxu0 %v458
  %483 = vmatprep.subr.mxu0 0.0
  %484 = vmatpush1.msra.mxu0 %v459
  %485 = vmatprep.subr.mxu0 0.0
  %486 = vmatpush1.msra.mxu0 %v460
  %487 = vmatprep.subr.mxu0 0.0
  %488 = vmatpush1.msra.mxu0 %v461
  %489 = vmatprep.subr.mxu0 0.0
  %490 = vmatpush1.msra.mxu0 %v462
  %491 = vmatprep.subr.mxu0 0.0
  %492 = vmatpush1.msra.mxu0 %v463
  %493 = vmatprep.subr.mxu0 0.0
  %494 = vmatpush1.msra.mxu0 0.0
  %495 = vmatprep.subr.mxu0 0.0
  %496 = vmatpush1.msra.mxu0 0.0
  %497 = vmatprep.subr.mxu0 0.0
  %498 = vmatpush1.msra.mxu0 0.0
  %499 = vmatprep.subr.mxu0 0.0
  %500 = vmatpush1.msra.mxu0 0.0
  %501 = vmatprep.subr.mxu0 0.0
  %502 = vmatpush1.msra.mxu0 0.0
  %503 = vmatprep.subr.mxu0 0.0
  %504 = vmatpush1.msra.mxu0 0.0
  %505 = vmatprep.subr.mxu0 0.0
  %506 = vmatpush1.msra.mxu0 0.0
  %507 = vmatprep.subr.mxu0 0.0
  %508 = vmatpush1.msra.mxu0 0.0
  %509 = vmatprep.subr.mxu0 0.0
  %510 = vmatpush1.msra.mxu0 0.0
  %511 = vmatprep.subr.mxu0 0.0
  %512 = vmatpush1.msra.mxu0 0.0
  %513 = vmatprep.subr.mxu0 0.0
  %514 = vmatpush1.msra.mxu0 0.0
  %515 = vmatprep.subr.mxu0 0.0
  %516 = vmatpush1.msra.mxu0 0.0
  %517 = vmatprep.subr.mxu0 0.0
  %518 = vmatpush1.msra.mxu0 0.0
  %519 = vmatprep.subr.mxu0 0.0
  %520 = vmatpush1.msra.mxu0 0.0
  %521 = vmatprep.subr.mxu0 0.0
  %522 = vmatpush1.msra.mxu0 0.0
  %523 = vmatprep.subr.mxu0 0.0
  %524 = vmatpush1.msra.mxu0 0.0
  %525 = vmatprep.subr.mxu0 0.0
  %526 = vmatpush1.msra.mxu0 0.0
  %527 = vmatprep.subr.mxu0 0.0
  %528 = vmatpush1.msra.mxu0 0.0
  %529 = vmatprep.subr.mxu0 0.0
  %530 = vmatpush1.msra.mxu0 0.0
  %531 = vmatprep.subr.mxu0 0.0
  %532 = vmatpush1.msra.mxu0 0.0
  %533 = vmatprep.subr.mxu0 0.0
  %534 = vmatpush1.msra.mxu0 0.0
  %535 = vmatprep.subr.mxu0 0.0
  %536 = vmatpush1.msra.mxu0 0.0
  %537 = vmatprep.subr.mxu0 0.0
  %538 = vmatpush1.msra.mxu0 0.0
  %539 = vmatprep.subr.mxu0 0.0
  %540 = vmatpush1.msra.mxu0 0.0
  %541 = vmatprep.mubr.f32.mxu0 0.0
  %542 = vmatmul.mubr.f32.gmra.mrb[0].mxu0 %v472
  %v543 = vpop.f32.mrb[0].mxu0
  %v544 = vadd.f32 %v469, %v543
  %v545 = vpop.f32.mrb[0].mxu0
  %546 = vmatprep.mubr.f32.mxu0 0.0
  %547 = vmatmul.mubr.f32.gmra.mrb[0].mxu0 %v475
  %v548 = vpop.f32.mrb[0].mxu0
  %v549 = vadd.f32 %v469, %v548
  %v550 = vpop.f32.mrb[0].mxu0
  %551 = vdwg.mxu0
  %v552 = vld [vmem:[%s10] sm:$0xff]
  %v553 = vld [vmem:[%s10 + $0x8] sm:$0xff]
  %v554 = vld [vmem:[%s10 + $0x10] sm:$0xff]
  %v555 = vld [vmem:[%s10 + $0x18] sm:$0xff]
  %v556 = vld [vmem:[%s10 + $0x20] sm:$0xff]
  %v557 = vld [vmem:[%s10 + $0x28] sm:$0xff]
  %v558 = vld [vmem:[%s10 + $0x30] sm:$0xff]
  %v559 = vld [vmem:[%s10 + $0x38] sm:$0xff]
  %560 = vmatprep.subr.mxu0 0.0
  %561 = vmatpush1.msra.mxu0 %v552
  %562 = vmatprep.subr.mxu0 0.0
  %563 = vmatpush1.msra.mxu0 %v553
  %564 = vmatprep.subr.mxu0 0.0
  %565 = vmatpush1.msra.mxu0 %v554
  %566 = vmatprep.subr.mxu0 0.0
  %567 = vmatpush1.msra.mxu0 %v555
  %568 = vmatprep.subr.mxu0 0.0
  %569 = vmatpush1.msra.mxu0 %v556
  %570 = vmatprep.subr.mxu0 0.0
  %571 = vmatpush1.msra.mxu0 %v557
  %572 = vmatprep.subr.mxu0 0.0
  %573 = vmatpush1.msra.mxu0 %v558
  %574 = vmatprep.subr.mxu0 0.0
  %575 = vmatpush1.msra.mxu0 %v559
  %576 = vmatprep.subr.mxu0 0.0
  %577 = vmatpush1.msra.mxu0 0.0
  %578 = vmatprep.subr.mxu0 0.0
  %579 = vmatpush1.msra.mxu0 0.0
  %580 = vmatprep.subr.mxu0 0.0
  %581 = vmatpush1.msra.mxu0 0.0
  %582 = vmatprep.subr.mxu0 0.0
  %583 = vmatpush1.msra.mxu0 0.0
  %584 = vmatprep.subr.mxu0 0.0
  %585 = vmatpush1.msra.mxu0 0.0
  %586 = vmatprep.subr.mxu0 0.0
  %587 = vmatpush1.msra.mxu0 0.0
  %588 = vmatprep.subr.mxu0 0.0
  %589 = vmatpush1.msra.mxu0 0.0
  %590 = vmatprep.subr.mxu0 0.0
  %591 = vmatpush1.msra.mxu0 0.0
  %592 = vmatprep.subr.mxu0 0.0
  %593 = vmatpush1.msra.mxu0 0.0
  %594 = vmatprep.subr.mxu0 0.0
  %595 = vmatpush1.msra.mxu0 0.0
  %596 = vmatprep.subr.mxu0 0.0
  %597 = vmatpush1.msra.mxu0 0.0
  %598 = vmatprep.subr.mxu0 0.0
  %599 = vmatpush1.msra.mxu0 0.0
  %600 = vmatprep.subr.mxu0 0.0
  %601 = vmatpush1.msra.mxu0 0.0
  %602 = vmatprep.subr.mxu0 0.0
  %603 = vmatpush1.msra.mxu0 0.0
  %604 = vmatprep.subr.mxu0 0.0
  %605 = vmatpush1.msra.mxu0 0.0
  %606 = vmatprep.subr.mxu0 0.0
  %607 = vmatpush1.msra.mxu0 0.0
  %608 = vmatprep.subr.mxu0 0.0
  %609 = vmatpush1.msra.mxu0 0.0
  %610 = vmatprep.subr.mxu0 0.0
  %611 = vmatpush1.msra.mxu0 0.0
  %612 = vmatprep.subr.mxu0 0.0
  %613 = vmatpush1.msra.mxu0 0.0
  %614 = vmatprep.subr.mxu0 0.0
  %615 = vmatpush1.msra.mxu0 0.0
  %616 = vmatprep.subr.mxu0 0.0
  %617 = vmatpush1.msra.mxu0 0.0
  %618 = vmatprep.subr.mxu0 0.0
  %619 = vmatpush1.msra.mxu0 0.0
  %620 = vmatprep.subr.mxu0 0.0
  %621 = vmatpush1.msra.mxu0 0.0
  %622 = vmatprep.subr.mxu0 0.0
  %623 = vmatpush1.msra.mxu0 0.0
  %624 = vmatprep.mubr.f32.mxu0 0.0
  %625 = vmatmul.mubr.f32.gmra.mrb[0].mxu0 %v472
  %v626 = vpop.f32.mrb[0].mxu0
  %v627 = vadd.f32 0.0, %v626
  %v628 = vpop.f32.mrb[0].mxu0
  %629 = vmatprep.mubr.f32.mxu0 0.0
  %630 = vmatmul.mubr.f32.gmra.mrb[0].mxu0 %v475
  %v631 = vpop.f32.mrb[0].mxu0
  %v632 = vadd.f32 0.0, %v631
  %v633 = vpop.f32.mrb[0].mxu0
  %634 = vmatprep.mubr.f32.mxu0 0.0
  %635 = vmatmul.mubr.f32.gmra.mrb[0].mxu0 %v376
  %v636 = vpop.f32.mrb[0].mxu0
  %v637 = vadd.f32 0.0, %v636
  %v638 = vpop.f32.mrb[0].mxu0
  %639 = vmatprep.mubr.f32.mxu0 0.0
  %640 = vmatmul.mubr.f32.gmra.mrb[0].mxu0 %v379
  %v641 = vpop.f32.mrb[0].mxu0
  %v642 = vadd.f32 0.0, %v641
  %v643 = vpop.f32.mrb[0].mxu0
  %644 = vdwg.mxu0
  %v645 = vld [vmem:[%s11] sm:$0xff]
  %v646 = vld [vmem:[%s11 + $0x8] sm:$0xff]
  %v647 = vld [vmem:[%s11 + $0x10] sm:$0xff]
  %v648 = vld [vmem:[%s11 + $0x18] sm:$0xff]
  %v649 = vld [vmem:[%s11 + $0x20] sm:$0xff]
  %v650 = vld [vmem:[%s11 + $0x28] sm:$0xff]
  %v651 = vld [vmem:[%s11 + $0x30] sm:$0xff]
  %v652 = vld [vmem:[%s11 + $0x38] sm:$0xff]
  %653 = vmatprep.subr.mxu0 0.0
  %654 = vmatpush1.msra.mxu0 %v645
  %655 = vmatprep.subr.mxu0 0.0
  %656 = vmatpush1.msra.mxu0 %v646
  %657 = vmatprep.subr.mxu0 0.0
  %658 = vmatpush1.msra.mxu0 %v647
  %659 = vmatprep.subr.mxu0 0.0
  %660 = vmatpush1.msra.mxu0 %v648
  %661 = vmatprep.subr.mxu0 0.0
  %662 = vmatpush1.msra.mxu0 %v649
  %663 = vmatprep.subr.mxu0 0.0
  %664 = vmatpush1.msra.mxu0 %v650
  %665 = vmatprep.subr.mxu0 0.0
  %666 = vmatpush1.msra.mxu0 %v651
  %667 = vmatprep.subr.mxu0 0.0
  %668 = vmatpush1.msra.mxu0 %v652
  %669 = vmatprep.subr.mxu0 0.0
  %670 = vmatpush1.msra.mxu0 0.0
  %671 = vmatprep.subr.mxu0 0.0
  %672 = vmatpush1.msra.mxu0 0.0
  %673 = vmatprep.subr.mxu0 0.0
  %674 = vmatpush1.msra.mxu0 0.0
  %675 = vmatprep.subr.mxu0 0.0
  %676 = vmatpush1.msra.mxu0 0.0
  %677 = vmatprep.subr.mxu0 0.0
  %678 = vmatpush1.msra.mxu0 0.0
  %679 = vmatprep.subr.mxu0 0.0
  %680 = vmatpush1.msra.mxu0 0.0
  %681 = vmatprep.subr.mxu0 0.0
  %682 = vmatpush1.msra.mxu0 0.0
  %683 = vmatprep.subr.mxu0 0.0
  %684 = vmatpush1.msra.mxu0 0.0
  %685 = vmatprep.subr.mxu0 0.0
  %686 = vmatpush1.msra.mxu0 0.0
  %687 = vmatprep.subr.mxu0 0.0
  %688 = vmatpush1.msra.mxu0 0.0
  %689 = vmatprep.subr.mxu0 0.0
  %690 = vmatpush1.msra.mxu0 0.0
  %691 = vmatprep.subr.mxu0 0.0
  %692 = vmatpush1.msra.mxu0 0.0
  %693 = vmatprep.subr.mxu0 0.0
  %694 = vmatpush1.msra.mxu0 0.0
  %695 = vmatprep.subr.mxu0 0.0
  %696 = vmatpush1.msra.mxu0 0.0
  %697 = vmatprep.subr.mxu0 0.0
  %698 = vmatpush1.msra.mxu0 0.0
  %699 = vmatprep.subr.mxu0 0.0
  %700 = vmatpush1.msra.mxu0 0.0
  %701 = vmatprep.subr.mxu0 0.0
  %702 = vmatpush1.msra.mxu0 0.0
  %703 = vmatprep.subr.mxu0 0.0
  %704 = vmatpush1.msra.mxu0 0.0
  %705 = vmatprep.subr.mxu0 0.0
  %706 = vmatpush1.msra.mxu0 0.0
  %707 = vmatprep.subr.mxu0 0.0
  %708 = vmatpush1.msra.mxu0 0.0
  %709 = vmatprep.subr.mxu0 0.0
  %710 = vmatpush1.msra.mxu0 0.0
  %711 = vmatprep.subr.mxu0 0.0
  %712 = vmatpush1.msra.mxu0 0.0
  %713 = vmatprep.subr.mxu0 0.0
  %714 = vmatpush1.msra.mxu0 0.0
  %715 = vmatprep.subr.mxu0 0.0
  %716 = vmatpush1.msra.mxu0 0.0
  %717 = vmatprep.mubr.f32.mxu0 0.0
  %718 = vmatmul.mubr.f32.gmra.mrb[0].mxu0 %v472
  %v719 = vpop.f32.mrb[0].mxu0
  %v720 = vadd.f32 0.0, %v719
  %v721 = vpop.f32.mrb[0].mxu0
  %722 = vmatprep.mubr.f32.mxu0 0.0
  %723 = vmatmul.mubr.f32.gmra.mrb[0].mxu0 %v475
  %v724 = vpop.f32.mrb[0].mxu0
  %v725 = vadd.f32 0.0, %v724
  %v726 = vpop.f32.mrb[0].mxu0
  %727 = vmatprep.mubr.f32.mxu0 0.0
  %728 = vmatmul.mubr.f32.gmra.mrb[0].mxu0 %v376
  %v729 = vpop.f32.mrb[0].mxu0
  %v730 = vadd.f32 0.0, %v729
  %v731 = vpop.f32.mrb[0].mxu0
  %732 = vmatprep.mubr.f32.mxu0 0.0
  %733 = vmatmul.mubr.f32.gmra.mrb[0].mxu0 %v379
  %v734 = vpop.f32.mrb[0].mxu0
  %v735 = vadd.f32 0.0, %v734
  %v736 = vpop.f32.mrb[0].mxu0
  %737 = vdwg.mxu0
  %v738 = vld [vmem:[%s12] sm:$0xff]
  %v739 = vld [vmem:[%s12 + $0x8] sm:$0xff]
  %v740 = vld [vmem:[%s12 + $0x10] sm:$0xff]
  %v741 = vld [vmem:[%s12 + $0x18] sm:$0xff]
  %v742 = vld [vmem:[%s12 + $0x20] sm:$0xff]
  %v743 = vld [vmem:[%s12 + $0x28] sm:$0xff]
  %v744 = vld [vmem:[%s12 + $0x30] sm:$0xff]
  %v745 = vld [vmem:[%s12 + $0x38] sm:$0xff]
  %v747 = vsel %vm374, %v448, 0
  %v750 = vsel %vm374, %v453, 0
  %v753 = vsel %vm374, %v544, 0
  %v756 = vsel %vm374, %v549, 0
  %758 = vmatprep.subr.mxu0 0.0
  %759 = vmatpush1.msra.mxu0 %v738
  %760 = vmatprep.subr.mxu0 0.0
  %761 = vmatpush1.msra.mxu0 %v739
  %762 = vmatprep.subr.mxu0 0.0
  %763 = vmatpush1.msra.mxu0 %v740
  %764 = vmatprep.subr.mxu0 0.0
  %765 = vmatpush1.msra.mxu0 %v741
  %766 = vmatprep.subr.mxu0 0.0
  %767 = vmatpush1.msra.mxu0 %v742
  %768 = vmatprep.subr.mxu0 0.0
  %769 = vmatpush1.msra.mxu0 %v743
  %770 = vmatprep.subr.mxu0 0.0
  %771 = vmatpush1.msra.mxu0 %v744
  %772 = vmatprep.subr.mxu0 0.0
  %773 = vmatpush1.msra.mxu0 %v745
  %774 = vmatprep.subr.mxu0 0.0
  %775 = vmatpush1.msra.mxu0 0.0
  %776 = vmatprep.subr.mxu0 0.0
  %777 = vmatpush1.msra.mxu0 0.0
  %778 = vmatprep.subr.mxu0 0.0
  %779 = vmatpush1.msra.mxu0 0.0
  %780 = vmatprep.subr.mxu0 0.0
  %781 = vmatpush1.msra.mxu0 0.0
  %782 = vmatprep.subr.mxu0 0.0
  %783 = vmatpush1.msra.mxu0 0.0
  %784 = vmatprep.subr.mxu0 0.0
  %785 = vmatpush1.msra.mxu0 0.0
  %786 = vmatprep.subr.mxu0 0.0
  %787 = vmatpush1.msra.mxu0 0.0
  %788 = vmatprep.subr.mxu0 0.0
  %789 = vmatpush1.msra.mxu0 0.0
  %790 = vmatprep.subr.mxu0 0.0
  %791 = vmatpush1.msra.mxu0 0.0
  %792 = vmatprep.subr.mxu0 0.0
  %793 = vmatpush1.msra.mxu0 0.0
  %794 = vmatprep.subr.mxu0 0.0
  %795 = vmatpush1.msra.mxu0 0.0
  %796 = vmatprep.subr.mxu0 0.0
  %797 = vmatpush1.msra.mxu0 0.0
  %798 = vmatprep.subr.mxu0 0.0
  %799 = vmatpush1.msra.mxu0 0.0
  %800 = vmatprep.subr.mxu0 0.0
  %801 = vmatpush1.msra.mxu0 0.0
  %802 = vmatprep.subr.mxu0 0.0
  %803 = vmatpush1.msra.mxu0 0.0
  %804 = vmatprep.subr.mxu0 0.0
  %805 = vmatpush1.msra.mxu0 0.0
  %806 = vmatprep.subr.mxu0 0.0
  %807 = vmatpush1.msra.mxu0 0.0
  %808 = vmatprep.subr.mxu0 0.0
  %809 = vmatpush1.msra.mxu0 0.0
  %810 = vmatprep.subr.mxu0 0.0
  %811 = vmatpush1.msra.mxu0 0.0
  %812 = vmatprep.subr.mxu0 0.0
  %813 = vmatpush1.msra.mxu0 0.0
  %814 = vmatprep.subr.mxu0 0.0
  %815 = vmatpush1.msra.mxu0 0.0
  %816 = vmatprep.subr.mxu0 0.0
  %817 = vmatpush1.msra.mxu0 0.0
  %818 = vmatprep.subr.mxu0 0.0
  %819 = vmatpush1.msra.mxu0 0.0
  %820 = vmatprep.subr.mxu0 0.0
  %821 = vmatpush1.msra.mxu0 0.0
  %822 = vmatprep.mubr.f32.mxu0 0.0
  %823 = vmatmul.mubr.f32.gmra.mrb[0].mxu0 %v747
  %v824 = vpop.f32.mrb[0].mxu0
  %v825 = vadd.f32 0.0, %v824
  %v826 = vpop.f32.mrb[0].mxu0
  %827 = vmatprep.mubr.f32.mxu0 0.0
  %828 = vmatmul.mubr.f32.gmra.mrb[0].mxu0 %v750
  %v829 = vpop.f32.mrb[0].mxu0
  %v830 = vadd.f32 0.0, %v829
  %v831 = vpop.f32.mrb[0].mxu0
  %832 = vmatprep.mubr.f32.mxu0 0.0
  %833 = vmatmul.mubr.f32.gmra.mrb[0].mxu0 %v753
  %v834 = vpop.f32.mrb[0].mxu0
  %v835 = vadd.f32 0.0, %v834
  %v836 = vpop.f32.mrb[0].mxu0
  %837 = vmatprep.mubr.f32.mxu0 0.0
  %838 = vmatmul.mubr.f32.gmra.mrb[0].mxu0 %v756
  %v839 = vpop.f32.mrb[0].mxu0
  %v840 = vadd.f32 0.0, %v839
  %v841 = vpop.f32.mrb[0].mxu0
  %842 = vdwg.mxu0
  %v843 = vld [vmem:[%s13] sm:$0xff]
  %v844 = vld [vmem:[%s13 + $0x8] sm:$0xff]
  %v845 = vld [vmem:[%s13 + $0x10] sm:$0xff]
  %v846 = vld [vmem:[%s13 + $0x18] sm:$0xff]
  %v847 = vld [vmem:[%s13 + $0x20] sm:$0xff]
  %v848 = vld [vmem:[%s13 + $0x28] sm:$0xff]
  %v849 = vld [vmem:[%s13 + $0x30] sm:$0xff]
  %v850 = vld [vmem:[%s13 + $0x38] sm:$0xff]
  %v851 = vld [vmem:[%s14] sm:$0xf]
  %v852 = vld [vmem:[%s15] sm:$0xff]
  %v853 = vld [vmem:[%s15 + $0x8] sm:$0xff]
  %v854 = vld [vmem:[%s15 + $0x10] sm:$0xff]
  %v855 = vld [vmem:[%s15 + $0x18] sm:$0xff]
  %v856 = vld [vmem:[%s15 + $0x20] sm:$0xff]
  %v857 = vld [vmem:[%s15 + $0x28] sm:$0xff]
  %v858 = vld [vmem:[%s15 + $0x30] sm:$0xff]
  %v859 = vld [vmem:[%s15 + $0x38] sm:$0xff]
  %864 = vrot.lane.b32.xlu0 %v627, 16
  %v865 = vpop.permute.xlu0 %864
  %866 = vrot.lane.b32.xlu0 %v632, 16
  %v867 = vpop.permute.xlu0 %866
  %868 = vrot.lane.b32.xlu0 %v637, 16
  %v869 = vpop.permute.xlu0 %868
  %870 = vrot.lane.b32.xlu0 %v642, 16
  %v871 = vpop.permute.xlu0 %870
  %876 = vrot.lane.b32.xlu0 %v627, 32
  %v877 = vpop.permute.xlu0 %876
  %878 = vrot.lane.b32.xlu0 %v632, 32
  %v879 = vpop.permute.xlu0 %878
  %880 = vrot.lane.b32.xlu0 %v637, 32
  %v881 = vpop.permute.xlu0 %880
  %882 = vrot.lane.b32.xlu0 %v642, 32
  %v883 = vpop.permute.xlu0 %882
  %888 = vrot.lane.b32.xlu0 %v627, 48
  %v889 = vpop.permute.xlu0 %888
  %890 = vrot.lane.b32.xlu0 %v632, 48
  %v891 = vpop.permute.xlu0 %890
  %892 = vrot.lane.b32.xlu0 %v637, 48
  %v893 = vpop.permute.xlu0 %892
  %894 = vrot.lane.b32.xlu0 %v642, 48
  %v895 = vpop.permute.xlu0 %894
  %vm900 = vcmask 130048
  %v901 = vsel %vm900, %v627, %v865
  %v902 = vsel %vm900, %v632, %v867
  %v903 = vsel %vm900, %v637, %v869
  %v904 = vsel %vm900, %v642, %v871
  %v905 = vsel %vm181, %v901, %v877
  %v906 = vsel %vm181, %v902, %v879
  %v907 = vsel %vm181, %v903, %v881
  %v908 = vsel %vm181, %v904, %v883
  %vm909 = vcmask 392192
  %v910 = vsel %vm909, %v905, %v889
  %v911 = vsel %vm909, %v906, %v891
  %v912 = vsel %vm909, %v907, %v893
  %v913 = vsel %vm909, %v908, %v895
  %v914 = vmul.f32 %v910, %v720
  %v915 = vmul.f32 %v911, %v725
  %v916 = vmul.f32 %v912, %v730
  %v917 = vmul.f32 %v913, %v735
  %v919 = vsel %vm374, %v914, 0
  %v922 = vsel %vm374, %v915, 0
  %v925 = vsel %vm374, %v916, 0
  %v928 = vsel %vm374, %v917, 0
  %930 = vmatprep.subr.mxu0 0.0
  %931 = vmatpush1.msra.mxu0 %v843
  %932 = vmatprep.subr.mxu0 0.0
  %933 = vmatpush1.msra.mxu0 %v844
  %934 = vmatprep.subr.mxu0 0.0
  %935 = vmatpush1.msra.mxu0 %v845
  %936 = vmatprep.subr.mxu0 0.0
  %937 = vmatpush1.msra.mxu0 %v846
  %938 = vmatprep.subr.mxu0 0.0
  %939 = vmatpush1.msra.mxu0 %v847
  %940 = vmatprep.subr.mxu0 0.0
  %941 = vmatpush1.msra.mxu0 %v848
  %942 = vmatprep.subr.mxu0 0.0
  %943 = vmatpush1.msra.mxu0 %v849
  %944 = vmatprep.subr.mxu0 0.0
  %945 = vmatpush1.msra.mxu0 %v850
  %946 = vmatprep.subr.mxu0 0.0
  %947 = vmatpush1.msra.mxu0 0.0
  %948 = vmatprep.subr.mxu0 0.0
  %949 = vmatpush1.msra.mxu0 0.0
  %950 = vmatprep.subr.mxu0 0.0
  %951 = vmatpush1.msra.mxu0 0.0
  %952 = vmatprep.subr.mxu0 0.0
  %953 = vmatpush1.msra.mxu0 0.0
  %954 = vmatprep.subr.mxu0 0.0
  %955 = vmatpush1.msra.mxu0 0.0
  %956 = vmatprep.subr.mxu0 0.0
  %957 = vmatpush1.msra.mxu0 0.0
  %958 = vmatprep.subr.mxu0 0.0
  %959 = vmatpush1.msra.mxu0 0.0
  %960 = vmatprep.subr.mxu0 0.0
  %961 = vmatpush1.msra.mxu0 0.0
  %962 = vmatprep.subr.mxu0 0.0
  %963 = vmatpush1.msra.mxu0 0.0
  %964 = vmatprep.subr.mxu0 0.0
  %965 = vmatpush1.msra.mxu0 0.0
  %966 = vmatprep.subr.mxu0 0.0
  %967 = vmatpush1.msra.mxu0 0.0
  %968 = vmatprep.subr.mxu0 0.0
  %969 = vmatpush1.msra.mxu0 0.0
  %970 = vmatprep.subr.mxu0 0.0
  %971 = vmatpush1.msra.mxu0 0.0
  %972 = vmatprep.subr.mxu0 0.0
  %973 = vmatpush1.msra.mxu0 0.0
  %974 = vmatprep.subr.mxu0 0.0
  %975 = vmatpush1.msra.mxu0 0.0
  %976 = vmatprep.subr.mxu0 0.0
  %977 = vmatpush1.msra.mxu0 0.0
  %978 = vmatprep.subr.mxu0 0.0
  %979 = vmatpush1.msra.mxu0 0.0
  %980 = vmatprep.subr.mxu0 0.0
  %981 = vmatpush1.msra.mxu0 0.0
  %982 = vmatprep.subr.mxu0 0.0
  %983 = vmatpush1.msra.mxu0 0.0
  %984 = vmatprep.subr.mxu0 0.0
  %985 = vmatpush1.msra.mxu0 0.0
  %986 = vmatprep.subr.mxu0 0.0
  %987 = vmatpush1.msra.mxu0 0.0
  %988 = vmatprep.subr.mxu0 0.0
  %989 = vmatpush1.msra.mxu0 0.0
  %990 = vmatprep.subr.mxu0 0.0
  %991 = vmatpush1.msra.mxu0 0.0
  %992 = vmatprep.subr.mxu0 0.0
  %993 = vmatpush1.msra.mxu0 0.0
  %994 = vmatprep.mubr.f32.mxu0 0.0
  %995 = vmatmul.mubr.f32.gmra.mrb[0].mxu0 %v919
  %v996 = vpop.f32.mrb[0].mxu0
  %v997 = vadd.f32 0.0, %v996
  %v998 = vpop.f32.mrb[0].mxu0
  %999 = vmatprep.mubr.f32.mxu0 0.0
  %1000 = vmatmul.mubr.f32.gmra.mrb[0].mxu0 %v922
  %v1001 = vpop.f32.mrb[0].mxu0
  %v1002 = vadd.f32 0.0, %v1001
  %v1003 = vpop.f32.mrb[0].mxu0
  %1004 = vmatprep.mubr.f32.mxu0 0.0
  %1005 = vmatmul.mubr.f32.gmra.mrb[0].mxu0 %v925
  %v1006 = vpop.f32.mrb[0].mxu0
  %v1007 = vadd.f32 0.0, %v1006
  %v1008 = vpop.f32.mrb[0].mxu0
  %1009 = vmatprep.mubr.f32.mxu0 0.0
  %1010 = vmatmul.mubr.f32.gmra.mrb[0].mxu0 %v928
  %v1011 = vpop.f32.mrb[0].mxu0
  %v1012 = vadd.f32 0.0, %v1011
  %v1013 = vpop.f32.mrb[0].mxu0
  %1014 = vdwg.mxu0
  %vm1015 = vcmask 31744
  %v1016 = vsel %vm1015, %v997, -inf
  %1017 = vmax.xlane.f32.xlu0 %v1016
  %v1018 = vpop.xlane.xlu0 %1017
  %v1019 = vsel %vm1015, %v1002, -inf
  %1020 = vmax.xlane.f32.xlu0 %v1019
  %v1021 = vpop.xlane.xlu0 %1020
  %v1022 = vsel %vm1015, %v1007, -inf
  %1023 = vmax.xlane.f32.xlu0 %v1022
  %v1024 = vpop.xlane.xlu0 %1023
  %v1025 = vsel %vm1015, %v1012, -inf
  %1026 = vmax.xlane.f32.xlu0 %v1025
  %v1027 = vpop.xlane.xlu0 %1026
  %v1028 = vsub.f32 %v997, %v1018
  %v1029 = vsub.f32 %v1002, %v1021
  %v1030 = vsub.f32 %v1007, %v1024
  %v1031 = vsub.f32 %v1012, %v1027
  %v1032 = vmul.f32 %v1028, 1.442695
  %v1033 = vpow.pop %v1032
  %v1034 = vmul.f32 %v1029, 1.442695
  %v1035 = vpow.pop %v1034
  %v1036 = vmul.f32 %v1030, 1.442695
  %v1037 = vpow.pop %v1036
  %v1038 = vmul.f32 %v1031, 1.442695
  %v1039 = vpow.pop %v1038
  %v1040 = vsel %vm1015, %v1033, 0.0
  %1041 = vadd.xlane.f32.xlu0 %v1040
  %v1042 = vpop.xlane.xlu0 %1041
  %v1043 = vsel %vm1015, %v1035, 0.0
  %1044 = vadd.xlane.f32.xlu0 %v1043
  %v1045 = vpop.xlane.xlu0 %1044
  %v1046 = vsel %vm1015, %v1037, 0.0
  %1047 = vadd.xlane.f32.xlu0 %v1046
  %v1048 = vpop.xlane.xlu0 %1047
  %v1049 = vsel %vm1015, %v1039, 0.0
  %1050 = vadd.xlane.f32.xlu0 %v1049
  %v1051 = vpop.xlane.xlu0 %1050
  %v1052 = vrcp.pop %v1042
  %v1053 = vmul.f32 %v1033, %v1052
  %v1054 = vrcp.pop %v1045
  %v1055 = vmul.f32 %v1035, %v1054
  %v1056 = vrcp.pop %v1048
  %v1057 = vmul.f32 %v1037, %v1056
  %v1058 = vrcp.pop %v1051
  %v1059 = vmul.f32 %v1039, %v1058
  %v1061 = vsel %vm1015, %v1053, 0
  %v1064 = vsel %vm1015, %v1055, 0
  %v1067 = vsel %vm1015, %v1057, 0
  %v1070 = vsel %vm1015, %v1059, 0
  %vm1072 = vcmask 1043456
  %v1074 = vsel %vm1072, %v851, 0
  %1076 = vmatprep.subr.mxu0 0.0
  %1077 = vmatpush1.msra.mxu0 %v1074
  %1078 = vmatprep.subr.mxu0 0.0
  %1079 = vmatpush1.msra.mxu0 0.0
  %1080 = vmatprep.subr.mxu0 0.0
  %1081 = vmatpush1.msra.mxu0 0.0
  %1082 = vmatprep.subr.mxu0 0.0
  %1083 = vmatpush1.msra.mxu0 0.0
  %1084 = vmatprep.subr.mxu0 0.0
  %1085 = vmatpush1.msra.mxu0 0.0
  %1086 = vmatprep.subr.mxu0 0.0
  %1087 = vmatpush1.msra.mxu0 0.0
  %1088 = vmatprep.subr.mxu0 0.0
  %1089 = vmatpush1.msra.mxu0 0.0
  %1090 = vmatprep.subr.mxu0 0.0
  %1091 = vmatpush1.msra.mxu0 0.0
  %1092 = vmatprep.subr.mxu0 0.0
  %1093 = vmatpush1.msra.mxu0 0.0
  %1094 = vmatprep.subr.mxu0 0.0
  %1095 = vmatpush1.msra.mxu0 0.0
  %1096 = vmatprep.subr.mxu0 0.0
  %1097 = vmatpush1.msra.mxu0 0.0
  %1098 = vmatprep.subr.mxu0 0.0
  %1099 = vmatpush1.msra.mxu0 0.0
  %1100 = vmatprep.subr.mxu0 0.0
  %1101 = vmatpush1.msra.mxu0 0.0
  %1102 = vmatprep.subr.mxu0 0.0
  %1103 = vmatpush1.msra.mxu0 0.0
  %1104 = vmatprep.subr.mxu0 0.0
  %1105 = vmatpush1.msra.mxu0 0.0
  %1106 = vmatprep.subr.mxu0 0.0
  %1107 = vmatpush1.msra.mxu0 0.0
  %1108 = vmatprep.subr.mxu0 0.0
  %1109 = vmatpush1.msra.mxu0 0.0
  %1110 = vmatprep.subr.mxu0 0.0
  %1111 = vmatpush1.msra.mxu0 0.0
  %1112 = vmatprep.subr.mxu0 0.0
  %1113 = vmatpush1.msra.mxu0 0.0
  %1114 = vmatprep.subr.mxu0 0.0
  %1115 = vmatpush1.msra.mxu0 0.0
  %1116 = vmatprep.subr.mxu0 0.0
  %1117 = vmatpush1.msra.mxu0 0.0
  %1118 = vmatprep.subr.mxu0 0.0
  %1119 = vmatpush1.msra.mxu0 0.0
  %1120 = vmatprep.subr.mxu0 0.0
  %1121 = vmatpush1.msra.mxu0 0.0
  %1122 = vmatprep.subr.mxu0 0.0
  %1123 = vmatpush1.msra.mxu0 0.0
  %1124 = vmatprep.subr.mxu0 0.0
  %1125 = vmatpush1.msra.mxu0 0.0
  %1126 = vmatprep.subr.mxu0 0.0
  %1127 = vmatpush1.msra.mxu0 0.0
  %1128 = vmatprep.subr.mxu0 0.0
  %1129 = vmatpush1.msra.mxu0 0.0
  %1130 = vmatprep.subr.mxu0 0.0
  %1131 = vmatpush1.msra.mxu0 0.0
  %1132 = vmatprep.subr.mxu0 0.0
  %1133 = vmatpush1.msra.mxu0 0.0
  %1134 = vmatprep.subr.mxu0 0.0
  %1135 = vmatpush1.msra.mxu0 0.0
  %1136 = vmatprep.subr.mxu0 0.0
  %1137 = vmatpush1.msra.mxu0 0.0
  %1138 = vmatprep.subr.mxu0 0.0
  %1139 = vmatpush1.msra.mxu0 0.0
  %1140 = vmatprep.mubr.f32.mxu0 0.0
  %1141 = vmatmul.mubr.f32.gmra.mrb[0].mxu0 %v1061
  %v1142 = vpop.f32.mrb[0].mxu0
  %v1143 = vadd.f32 0.0, %v1142
  %v1144 = vpop.f32.mrb[0].mxu0
  %1145 = vmatprep.mubr.f32.mxu0 0.0
  %1146 = vmatmul.mubr.f32.gmra.mrb[0].mxu0 %v1064
  %v1147 = vpop.f32.mrb[0].mxu0
  %v1148 = vadd.f32 0.0, %v1147
  %v1149 = vpop.f32.mrb[0].mxu0
  %1150 = vmatprep.mubr.f32.mxu0 0.0
  %1151 = vmatmul.mubr.f32.gmra.mrb[0].mxu0 %v1067
  %v1152 = vpop.f32.mrb[0].mxu0
  %v1153 = vadd.f32 0.0, %v1152
  %v1154 = vpop.f32.mrb[0].mxu0
  %1155 = vmatprep.mubr.f32.mxu0 0.0
  %1156 = vmatmul.mubr.f32.gmra.mrb[0].mxu0 %v1070
  %v1157 = vpop.f32.mrb[0].mxu0
  %v1158 = vadd.f32 0.0, %v1157
  %v1159 = vpop.f32.mrb[0].mxu0
  %1160 = vdwg.mxu0
  %v1161 = vmul.f32 %v1143, %v825
  %v1162 = vmul.f32 %v1148, %v830
  %v1163 = vmul.f32 %v1153, %v835
  %v1164 = vmul.f32 %v1158, %v840
  %v1166 = vsel %vm374, %v1161, 0
  %v1169 = vsel %vm374, %v1162, 0
  %v1172 = vsel %vm374, %v1163, 0
  %v1175 = vsel %vm374, %v1164, 0
  %1177 = vmatprep.subr.mxu0 0.0
  %1178 = vmatpush1.msra.mxu0 %v852
  %1179 = vmatprep.subr.mxu0 0.0
  %1180 = vmatpush1.msra.mxu0 %v853
  %1181 = vmatprep.subr.mxu0 0.0
  %1182 = vmatpush1.msra.mxu0 %v854
  %1183 = vmatprep.subr.mxu0 0.0
  %1184 = vmatpush1.msra.mxu0 %v855
  %1185 = vmatprep.subr.mxu0 0.0
  %1186 = vmatpush1.msra.mxu0 %v856
  %1187 = vmatprep.subr.mxu0 0.0
  %1188 = vmatpush1.msra.mxu0 %v857
  %1189 = vmatprep.subr.mxu0 0.0
  %1190 = vmatpush1.msra.mxu0 %v858
  %1191 = vmatprep.subr.mxu0 0.0
  %1192 = vmatpush1.msra.mxu0 %v859
  %1193 = vmatprep.subr.mxu0 0.0
  %1194 = vmatpush1.msra.mxu0 0.0
  %1195 = vmatprep.subr.mxu0 0.0
  %1196 = vmatpush1.msra.mxu0 0.0
  %1197 = vmatprep.subr.mxu0 0.0
  %1198 = vmatpush1.msra.mxu0 0.0
  %1199 = vmatprep.subr.mxu0 0.0
  %1200 = vmatpush1.msra.mxu0 0.0
  %1201 = vmatprep.subr.mxu0 0.0
  %1202 = vmatpush1.msra.mxu0 0.0
  %1203 = vmatprep.subr.mxu0 0.0
  %1204 = vmatpush1.msra.mxu0 0.0
  %1205 = vmatprep.subr.mxu0 0.0
  %1206 = vmatpush1.msra.mxu0 0.0
  %1207 = vmatprep.subr.mxu0 0.0
  %1208 = vmatpush1.msra.mxu0 0.0
  %1209 = vmatprep.subr.mxu0 0.0
  %1210 = vmatpush1.msra.mxu0 0.0
  %1211 = vmatprep.subr.mxu0 0.0
  %1212 = vmatpush1.msra.mxu0 0.0
  %1213 = vmatprep.subr.mxu0 0.0
  %1214 = vmatpush1.msra.mxu0 0.0
  %1215 = vmatprep.subr.mxu0 0.0
  %1216 = vmatpush1.msra.mxu0 0.0
  %1217 = vmatprep.subr.mxu0 0.0
  %1218 = vmatpush1.msra.mxu0 0.0
  %1219 = vmatprep.subr.mxu0 0.0
  %1220 = vmatpush1.msra.mxu0 0.0
  %1221 = vmatprep.subr.mxu0 0.0
  %1222 = vmatpush1.msra.mxu0 0.0
  %1223 = vmatprep.subr.mxu0 0.0
  %1224 = vmatpush1.msra.mxu0 0.0
  %1225 = vmatprep.subr.mxu0 0.0
  %1226 = vmatpush1.msra.mxu0 0.0
  %1227 = vmatprep.subr.mxu0 0.0
  %1228 = vmatpush1.msra.mxu0 0.0
  %1229 = vmatprep.subr.mxu0 0.0
  %1230 = vmatpush1.msra.mxu0 0.0
  %1231 = vmatprep.subr.mxu0 0.0
  %1232 = vmatpush1.msra.mxu0 0.0
  %1233 = vmatprep.subr.mxu0 0.0
  %1234 = vmatpush1.msra.mxu0 0.0
  %1235 = vmatprep.subr.mxu0 0.0
  %1236 = vmatpush1.msra.mxu0 0.0
  %1237 = vmatprep.subr.mxu0 0.0
  %1238 = vmatpush1.msra.mxu0 0.0
  %1239 = vmatprep.subr.mxu0 0.0
  %1240 = vmatpush1.msra.mxu0 0.0
  %1241 = vmatprep.mubr.f32.mxu0 0.0
  %1242 = vmatmul.mubr.f32.gmra.mrb[0].mxu0 %v1166
  %v1243 = vpop.f32.mrb[0].mxu0
  %v1244 = vadd.f32 0.0, %v1243
  %v1245 = vpop.f32.mrb[0].mxu0
  %1246 = vmatprep.mubr.f32.mxu0 0.0
  %1247 = vmatmul.mubr.f32.gmra.mrb[0].mxu0 %v1169
  %v1248 = vpop.f32.mrb[0].mxu0
  %v1249 = vadd.f32 0.0, %v1248
  %v1250 = vpop.f32.mrb[0].mxu0
  %1251 = vmatprep.mubr.f32.mxu0 0.0
  %1252 = vmatmul.mubr.f32.gmra.mrb[0].mxu0 %v1172
  %v1253 = vpop.f32.mrb[0].mxu0
  %v1254 = vadd.f32 0.0, %v1253
  %v1255 = vpop.f32.mrb[0].mxu0
  %1256 = vmatprep.mubr.f32.mxu0 0.0
  %1257 = vmatmul.mubr.f32.gmra.mrb[0].mxu0 %v1175
  %v1258 = vpop.f32.mrb[0].mxu0
  %v1259 = vadd.f32 0.0, %v1258
  %v1260 = vpop.f32.mrb[0].mxu0
  %1261 = vdwg.mxu0
  %1262 = vrot.lane.b32.xlu0 %v627, 112
  %v1263 = vpop.permute.xlu0 %1262
  %1264 = vrot.lane.b32.xlu0 %v632, 112
  %v1265 = vpop.permute.xlu0 %1264
  %1266 = vrot.lane.b32.xlu0 %v637, 112
  %v1267 = vpop.permute.xlu0 %1266
  %1268 = vrot.lane.b32.xlu0 %v642, 112
  %v1269 = vpop.permute.xlu0 %1268
  %v1274 = vsel %vm900, %v1263, %v627
  %v1275 = vsel %vm900, %v1265, %v632
  %v1276 = vsel %vm900, %v1267, %v637
  %v1277 = vsel %vm900, %v1269, %v642
  %v1278 = vsel %vm181, %v1274, %v865
  %v1279 = vsel %vm181, %v1275, %v867
  %v1280 = vsel %vm181, %v1276, %v869
  %v1281 = vsel %vm181, %v1277, %v871
  %v1282 = vsel %vm909, %v1278, %v877
  %v1283 = vsel %vm909, %v1279, %v879
  %v1284 = vsel %vm909, %v1280, %v881
  %v1285 = vsel %vm909, %v1281, %v883
  %v1286 = vmul.f32 %v1282, %v720
  %v1287 = vmul.f32 %v1283, %v725
  %v1288 = vmul.f32 %v1284, %v730
  %v1289 = vmul.f32 %v1285, %v735
  %v1291 = vsel %vm374, %v1286, 0
  %v1294 = vsel %vm374, %v1287, 0
  %v1297 = vsel %vm374, %v1288, 0
  %v1300 = vsel %vm374, %v1289, 0
  %1302 = vmatprep.subr.mxu0 0.0
  %1303 = vmatpush1.msra.mxu0 %v843
  %1304 = vmatprep.subr.mxu0 0.0
  %1305 = vmatpush1.msra.mxu0 %v844
  %1306 = vmatprep.subr.mxu0 0.0
  %1307 = vmatpush1.msra.mxu0 %v845
  %1308 = vmatprep.subr.mxu0 0.0
  %1309 = vmatpush1.msra.mxu0 %v846
  %1310 = vmatprep.subr.mxu0 0.0
  %1311 = vmatpush1.msra.mxu0 %v847
  %1312 = vmatprep.subr.mxu0 0.0
  %1313 = vmatpush1.msra.mxu0 %v848
  %1314 = vmatprep.subr.mxu0 0.0
  %1315 = vmatpush1.msra.mxu0 %v849
  %1316 = vmatprep.subr.mxu0 0.0
  %1317 = vmatpush1.msra.mxu0 %v850
  %1318 = vmatprep.subr.mxu0 0.0
  %1319 = vmatpush1.msra.mxu0 0.0
  %1320 = vmatprep.subr.mxu0 0.0
  %1321 = vmatpush1.msra.mxu0 0.0
  %1322 = vmatprep.subr.mxu0 0.0
  %1323 = vmatpush1.msra.mxu0 0.0
  %1324 = vmatprep.subr.mxu0 0.0
  %1325 = vmatpush1.msra.mxu0 0.0
  %1326 = vmatprep.subr.mxu0 0.0
  %1327 = vmatpush1.msra.mxu0 0.0
  %1328 = vmatprep.subr.mxu0 0.0
  %1329 = vmatpush1.msra.mxu0 0.0
  %1330 = vmatprep.subr.mxu0 0.0
  %1331 = vmatpush1.msra.mxu0 0.0
  %1332 = vmatprep.subr.mxu0 0.0
  %1333 = vmatpush1.msra.mxu0 0.0
  %1334 = vmatprep.subr.mxu0 0.0
  %1335 = vmatpush1.msra.mxu0 0.0
  %1336 = vmatprep.subr.mxu0 0.0
  %1337 = vmatpush1.msra.mxu0 0.0
  %1338 = vmatprep.subr.mxu0 0.0
  %1339 = vmatpush1.msra.mxu0 0.0
  %1340 = vmatprep.subr.mxu0 0.0
  %1341 = vmatpush1.msra.mxu0 0.0
  %1342 = vmatprep.subr.mxu0 0.0
  %1343 = vmatpush1.msra.mxu0 0.0
  %1344 = vmatprep.subr.mxu0 0.0
  %1345 = vmatpush1.msra.mxu0 0.0
  %1346 = vmatprep.subr.mxu0 0.0
  %1347 = vmatpush1.msra.mxu0 0.0
  %1348 = vmatprep.subr.mxu0 0.0
  %1349 = vmatpush1.msra.mxu0 0.0
  %1350 = vmatprep.subr.mxu0 0.0
  %1351 = vmatpush1.msra.mxu0 0.0
  %1352 = vmatprep.subr.mxu0 0.0
  %1353 = vmatpush1.msra.mxu0 0.0
  %1354 = vmatprep.subr.mxu0 0.0
  %1355 = vmatpush1.msra.mxu0 0.0
  %1356 = vmatprep.subr.mxu0 0.0
  %1357 = vmatpush1.msra.mxu0 0.0
  %1358 = vmatprep.subr.mxu0 0.0
  %1359 = vmatpush1.msra.mxu0 0.0
  %1360 = vmatprep.subr.mxu0 0.0
  %1361 = vmatpush1.msra.mxu0 0.0
  %1362 = vmatprep.subr.mxu0 0.0
  %1363 = vmatpush1.msra.mxu0 0.0
  %1364 = vmatprep.subr.mxu0 0.0
  %1365 = vmatpush1.msra.mxu0 0.0
  %1366 = vmatprep.mubr.f32.mxu0 0.0
  %1367 = vmatmul.mubr.f32.gmra.mrb[0].mxu0 %v1291
  %v1368 = vpop.f32.mrb[0].mxu0
  %v1369 = vadd.f32 0.0, %v1368
  %v1370 = vpop.f32.mrb[0].mxu0
  %1371 = vmatprep.mubr.f32.mxu0 0.0
  %1372 = vmatmul.mubr.f32.gmra.mrb[0].mxu0 %v1294
  %v1373 = vpop.f32.mrb[0].mxu0
  %v1374 = vadd.f32 0.0, %v1373
  %v1375 = vpop.f32.mrb[0].mxu0
  %1376 = vmatprep.mubr.f32.mxu0 0.0
  %1377 = vmatmul.mubr.f32.gmra.mrb[0].mxu0 %v1297
  %v1378 = vpop.f32.mrb[0].mxu0
  %v1379 = vadd.f32 0.0, %v1378
  %v1380 = vpop.f32.mrb[0].mxu0
  %1381 = vmatprep.mubr.f32.mxu0 0.0
  %1382 = vmatmul.mubr.f32.gmra.mrb[0].mxu0 %v1300
  %v1383 = vpop.f32.mrb[0].mxu0
  %v1384 = vadd.f32 0.0, %v1383
  %v1385 = vpop.f32.mrb[0].mxu0
  %1386 = vdwg.mxu0
  %v1387 = vsel %vm1015, %v1369, -inf
  %1388 = vmax.xlane.f32.xlu0 %v1387
  %v1389 = vpop.xlane.xlu0 %1388
  %v1390 = vsel %vm1015, %v1374, -inf
  %1391 = vmax.xlane.f32.xlu0 %v1390
  %v1392 = vpop.xlane.xlu0 %1391
  %v1393 = vsel %vm1015, %v1379, -inf
  %1394 = vmax.xlane.f32.xlu0 %v1393
  %v1395 = vpop.xlane.xlu0 %1394
  %v1396 = vsel %vm1015, %v1384, -inf
  %1397 = vmax.xlane.f32.xlu0 %v1396
  %v1398 = vpop.xlane.xlu0 %1397
  %v1399 = vsub.f32 %v1369, %v1389
  %v1400 = vsub.f32 %v1374, %v1392
  %v1401 = vsub.f32 %v1379, %v1395
  %v1402 = vsub.f32 %v1384, %v1398
  %v1403 = vmul.f32 %v1399, 1.442695
  %v1404 = vpow.pop %v1403
  %v1405 = vmul.f32 %v1400, 1.442695
  %v1406 = vpow.pop %v1405
  %v1407 = vmul.f32 %v1401, 1.442695
  %v1408 = vpow.pop %v1407
  %v1409 = vmul.f32 %v1402, 1.442695
  %v1410 = vpow.pop %v1409
  %v1411 = vsel %vm1015, %v1404, 0.0
  %1412 = vadd.xlane.f32.xlu0 %v1411
  %v1413 = vpop.xlane.xlu0 %1412
  %v1414 = vsel %vm1015, %v1406, 0.0
  %1415 = vadd.xlane.f32.xlu0 %v1414
  %v1416 = vpop.xlane.xlu0 %1415
  %v1417 = vsel %vm1015, %v1408, 0.0
  %1418 = vadd.xlane.f32.xlu0 %v1417
  %v1419 = vpop.xlane.xlu0 %1418
  %v1420 = vsel %vm1015, %v1410, 0.0
  %1421 = vadd.xlane.f32.xlu0 %v1420
  %v1422 = vpop.xlane.xlu0 %1421
  %v1423 = vrcp.pop %v1413
  %v1424 = vmul.f32 %v1404, %v1423
  %v1425 = vrcp.pop %v1416
  %v1426 = vmul.f32 %v1406, %v1425
  %v1427 = vrcp.pop %v1419
  %v1428 = vmul.f32 %v1408, %v1427
  %v1429 = vrcp.pop %v1422
  %v1430 = vmul.f32 %v1410, %v1429
  %v1432 = vsel %vm1015, %v1424, 0
  %v1435 = vsel %vm1015, %v1426, 0
  %v1438 = vsel %vm1015, %v1428, 0
  %v1441 = vsel %vm1015, %v1430, 0
  %1443 = vmatprep.subr.mxu0 0.0
  %1444 = vmatpush1.msra.mxu0 %v1074
  %1445 = vmatprep.subr.mxu0 0.0
  %1446 = vmatpush1.msra.mxu0 0.0
  %1447 = vmatprep.subr.mxu0 0.0
  %1448 = vmatpush1.msra.mxu0 0.0
  %1449 = vmatprep.subr.mxu0 0.0
  %1450 = vmatpush1.msra.mxu0 0.0
  %1451 = vmatprep.subr.mxu0 0.0
  %1452 = vmatpush1.msra.mxu0 0.0
  %1453 = vmatprep.subr.mxu0 0.0
  %1454 = vmatpush1.msra.mxu0 0.0
  %1455 = vmatprep.subr.mxu0 0.0
  %1456 = vmatpush1.msra.mxu0 0.0
  %1457 = vmatprep.subr.mxu0 0.0
  %1458 = vmatpush1.msra.mxu0 0.0
  %1459 = vmatprep.subr.mxu0 0.0
  %1460 = vmatpush1.msra.mxu0 0.0
  %1461 = vmatprep.subr.mxu0 0.0
  %1462 = vmatpush1.msra.mxu0 0.0
  %1463 = vmatprep.subr.mxu0 0.0
  %1464 = vmatpush1.msra.mxu0 0.0
  %1465 = vmatprep.subr.mxu0 0.0
  %1466 = vmatpush1.msra.mxu0 0.0
  %1467 = vmatprep.subr.mxu0 0.0
  %1468 = vmatpush1.msra.mxu0 0.0
  %1469 = vmatprep.subr.mxu0 0.0
  %1470 = vmatpush1.msra.mxu0 0.0
  %1471 = vmatprep.subr.mxu0 0.0
  %1472 = vmatpush1.msra.mxu0 0.0
  %1473 = vmatprep.subr.mxu0 0.0
  %1474 = vmatpush1.msra.mxu0 0.0
  %1475 = vmatprep.subr.mxu0 0.0
  %1476 = vmatpush1.msra.mxu0 0.0
  %1477 = vmatprep.subr.mxu0 0.0
  %1478 = vmatpush1.msra.mxu0 0.0
  %1479 = vmatprep.subr.mxu0 0.0
  %1480 = vmatpush1.msra.mxu0 0.0
  %1481 = vmatprep.subr.mxu0 0.0
  %1482 = vmatpush1.msra.mxu0 0.0
  %1483 = vmatprep.subr.mxu0 0.0
  %1484 = vmatpush1.msra.mxu0 0.0
  %1485 = vmatprep.subr.mxu0 0.0
  %1486 = vmatpush1.msra.mxu0 0.0
  %1487 = vmatprep.subr.mxu0 0.0
  %1488 = vmatpush1.msra.mxu0 0.0
  %1489 = vmatprep.subr.mxu0 0.0
  %1490 = vmatpush1.msra.mxu0 0.0
  %1491 = vmatprep.subr.mxu0 0.0
  %1492 = vmatpush1.msra.mxu0 0.0
  %1493 = vmatprep.subr.mxu0 0.0
  %1494 = vmatpush1.msra.mxu0 0.0
  %1495 = vmatprep.subr.mxu0 0.0
  %1496 = vmatpush1.msra.mxu0 0.0
  %1497 = vmatprep.subr.mxu0 0.0
  %1498 = vmatpush1.msra.mxu0 0.0
  %1499 = vmatprep.subr.mxu0 0.0
  %1500 = vmatpush1.msra.mxu0 0.0
  %1501 = vmatprep.subr.mxu0 0.0
  %1502 = vmatpush1.msra.mxu0 0.0
  %1503 = vmatprep.subr.mxu0 0.0
  %1504 = vmatpush1.msra.mxu0 0.0
  %1505 = vmatprep.subr.mxu0 0.0
  %1506 = vmatpush1.msra.mxu0 0.0
  %1507 = vmatprep.mubr.f32.mxu0 0.0
  %1508 = vmatmul.mubr.f32.gmra.mrb[0].mxu0 %v1432
  %v1509 = vpop.f32.mrb[0].mxu0
  %v1510 = vadd.f32 0.0, %v1509
  %v1511 = vpop.f32.mrb[0].mxu0
  %1512 = vmatprep.mubr.f32.mxu0 0.0
  %1513 = vmatmul.mubr.f32.gmra.mrb[0].mxu0 %v1435
  %v1514 = vpop.f32.mrb[0].mxu0
  %v1515 = vadd.f32 0.0, %v1514
  %v1516 = vpop.f32.mrb[0].mxu0
  %1517 = vmatprep.mubr.f32.mxu0 0.0
  %1518 = vmatmul.mubr.f32.gmra.mrb[0].mxu0 %v1438
  %v1519 = vpop.f32.mrb[0].mxu0
  %v1520 = vadd.f32 0.0, %v1519
  %v1521 = vpop.f32.mrb[0].mxu0
  %1522 = vmatprep.mubr.f32.mxu0 0.0
  %1523 = vmatmul.mubr.f32.gmra.mrb[0].mxu0 %v1441
  %v1524 = vpop.f32.mrb[0].mxu0
  %v1525 = vadd.f32 0.0, %v1524
  %v1526 = vpop.f32.mrb[0].mxu0
  %1527 = vdwg.mxu0
  %v1528 = vmul.f32 %v1510, %v825
  %v1529 = vmul.f32 %v1515, %v830
  %v1530 = vmul.f32 %v1520, %v835
  %v1531 = vmul.f32 %v1525, %v840
  %v1533 = vsel %vm374, %v1528, 0
  %v1536 = vsel %vm374, %v1529, 0
  %v1539 = vsel %vm374, %v1530, 0
  %v1542 = vsel %vm374, %v1531, 0
  %1544 = vmatprep.subr.mxu0 0.0
  %1545 = vmatpush1.msra.mxu0 %v852
  %1546 = vmatprep.subr.mxu0 0.0
  %1547 = vmatpush1.msra.mxu0 %v853
  %1548 = vmatprep.subr.mxu0 0.0
  %1549 = vmatpush1.msra.mxu0 %v854
  %1550 = vmatprep.subr.mxu0 0.0
  %1551 = vmatpush1.msra.mxu0 %v855
  %1552 = vmatprep.subr.mxu0 0.0
  %1553 = vmatpush1.msra.mxu0 %v856
  %1554 = vmatprep.subr.mxu0 0.0
  %1555 = vmatpush1.msra.mxu0 %v857
  %1556 = vmatprep.subr.mxu0 0.0
  %1557 = vmatpush1.msra.mxu0 %v858
  %1558 = vmatprep.subr.mxu0 0.0
  %1559 = vmatpush1.msra.mxu0 %v859
  %1560 = vmatprep.subr.mxu0 0.0
  %1561 = vmatpush1.msra.mxu0 0.0
  %1562 = vmatprep.subr.mxu0 0.0
  %1563 = vmatpush1.msra.mxu0 0.0
  %1564 = vmatprep.subr.mxu0 0.0
  %1565 = vmatpush1.msra.mxu0 0.0
  %1566 = vmatprep.subr.mxu0 0.0
  %1567 = vmatpush1.msra.mxu0 0.0
  %1568 = vmatprep.subr.mxu0 0.0
  %1569 = vmatpush1.msra.mxu0 0.0
  %1570 = vmatprep.subr.mxu0 0.0
  %1571 = vmatpush1.msra.mxu0 0.0
  %1572 = vmatprep.subr.mxu0 0.0
  %1573 = vmatpush1.msra.mxu0 0.0
  %1574 = vmatprep.subr.mxu0 0.0
  %1575 = vmatpush1.msra.mxu0 0.0
  %1576 = vmatprep.subr.mxu0 0.0
  %1577 = vmatpush1.msra.mxu0 0.0
  %1578 = vmatprep.subr.mxu0 0.0
  %1579 = vmatpush1.msra.mxu0 0.0
  %1580 = vmatprep.subr.mxu0 0.0
  %1581 = vmatpush1.msra.mxu0 0.0
  %1582 = vmatprep.subr.mxu0 0.0
  %1583 = vmatpush1.msra.mxu0 0.0
  %1584 = vmatprep.subr.mxu0 0.0
  %1585 = vmatpush1.msra.mxu0 0.0
  %1586 = vmatprep.subr.mxu0 0.0
  %1587 = vmatpush1.msra.mxu0 0.0
  %1588 = vmatprep.subr.mxu0 0.0
  %1589 = vmatpush1.msra.mxu0 0.0
  %1590 = vmatprep.subr.mxu0 0.0
  %1591 = vmatpush1.msra.mxu0 0.0
  %1592 = vmatprep.subr.mxu0 0.0
  %1593 = vmatpush1.msra.mxu0 0.0
  %1594 = vmatprep.subr.mxu0 0.0
  %1595 = vmatpush1.msra.mxu0 0.0
  %1596 = vmatprep.subr.mxu0 0.0
  %1597 = vmatpush1.msra.mxu0 0.0
  %1598 = vmatprep.subr.mxu0 0.0
  %1599 = vmatpush1.msra.mxu0 0.0
  %1600 = vmatprep.subr.mxu0 0.0
  %1601 = vmatpush1.msra.mxu0 0.0
  %1602 = vmatprep.subr.mxu0 0.0
  %1603 = vmatpush1.msra.mxu0 0.0
  %1604 = vmatprep.subr.mxu0 0.0
  %1605 = vmatpush1.msra.mxu0 0.0
  %1606 = vmatprep.subr.mxu0 0.0
  %1607 = vmatpush1.msra.mxu0 0.0
  %1608 = vmatprep.mubr.f32.mxu0 0.0
  %1609 = vmatmul.mubr.f32.gmra.mrb[0].mxu0 %v1533
  %v1610 = vpop.f32.mrb[0].mxu0
  %v1611 = vadd.f32 0.0, %v1610
  %v1612 = vpop.f32.mrb[0].mxu0
  %1613 = vmatprep.mubr.f32.mxu0 0.0
  %1614 = vmatmul.mubr.f32.gmra.mrb[0].mxu0 %v1536
  %v1615 = vpop.f32.mrb[0].mxu0
  %v1616 = vadd.f32 0.0, %v1615
  %v1617 = vpop.f32.mrb[0].mxu0
  %1618 = vmatprep.mubr.f32.mxu0 0.0
  %1619 = vmatmul.mubr.f32.gmra.mrb[0].mxu0 %v1539
  %v1620 = vpop.f32.mrb[0].mxu0
  %v1621 = vadd.f32 0.0, %v1620
  %v1622 = vpop.f32.mrb[0].mxu0
  %1623 = vmatprep.mubr.f32.mxu0 0.0
  %1624 = vmatmul.mubr.f32.gmra.mrb[0].mxu0 %v1542
  %v1625 = vpop.f32.mrb[0].mxu0
  %v1626 = vadd.f32 0.0, %v1625
  %v1627 = vpop.f32.mrb[0].mxu0
  %1628 = vdwg.mxu0
  %1629 = vrot.lane.b32.xlu0 %v627, 96
  %v1630 = vpop.permute.xlu0 %1629
  %1631 = vrot.lane.b32.xlu0 %v632, 96
  %v1632 = vpop.permute.xlu0 %1631
  %1633 = vrot.lane.b32.xlu0 %v637, 96
  %v1634 = vpop.permute.xlu0 %1633
  %1635 = vrot.lane.b32.xlu0 %v642, 96
  %v1636 = vpop.permute.xlu0 %1635
  %v1641 = vsel %vm900, %v1630, %v1263
  %v1642 = vsel %vm900, %v1632, %v1265
  %v1643 = vsel %vm900, %v1634, %v1267
  %v1644 = vsel %vm900, %v1636, %v1269
  %v1645 = vsel %vm181, %v1641, %v627
  %v1646 = vsel %vm181, %v1642, %v632
  %v1647 = vsel %vm181, %v1643, %v637
  %v1648 = vsel %vm181, %v1644, %v642
  %v1649 = vsel %vm909, %v1645, %v865
  %v1650 = vsel %vm909, %v1646, %v867
  %v1651 = vsel %vm909, %v1647, %v869
  %v1652 = vsel %vm909, %v1648, %v871
  %v1653 = vmul.f32 %v1649, %v720
  %v1654 = vmul.f32 %v1650, %v725
  %v1655 = vmul.f32 %v1651, %v730
  %v1656 = vmul.f32 %v1652, %v735
  %v1658 = vsel %vm374, %v1653, 0
  %v1661 = vsel %vm374, %v1654, 0
  %v1664 = vsel %vm374, %v1655, 0
  %v1667 = vsel %vm374, %v1656, 0
  %1669 = vmatprep.subr.mxu0 0.0
  %1670 = vmatpush1.msra.mxu0 %v843
  %1671 = vmatprep.subr.mxu0 0.0
  %1672 = vmatpush1.msra.mxu0 %v844
  %1673 = vmatprep.subr.mxu0 0.0
  %1674 = vmatpush1.msra.mxu0 %v845
  %1675 = vmatprep.subr.mxu0 0.0
  %1676 = vmatpush1.msra.mxu0 %v846
  %1677 = vmatprep.subr.mxu0 0.0
  %1678 = vmatpush1.msra.mxu0 %v847
  %1679 = vmatprep.subr.mxu0 0.0
  %1680 = vmatpush1.msra.mxu0 %v848
  %1681 = vmatprep.subr.mxu0 0.0
  %1682 = vmatpush1.msra.mxu0 %v849
  %1683 = vmatprep.subr.mxu0 0.0
  %1684 = vmatpush1.msra.mxu0 %v850
  %1685 = vmatprep.subr.mxu0 0.0
  %1686 = vmatpush1.msra.mxu0 0.0
  %1687 = vmatprep.subr.mxu0 0.0
  %1688 = vmatpush1.msra.mxu0 0.0
  %1689 = vmatprep.subr.mxu0 0.0
  %1690 = vmatpush1.msra.mxu0 0.0
  %1691 = vmatprep.subr.mxu0 0.0
  %1692 = vmatpush1.msra.mxu0 0.0
  %1693 = vmatprep.subr.mxu0 0.0
  %1694 = vmatpush1.msra.mxu0 0.0
  %1695 = vmatprep.subr.mxu0 0.0
  %1696 = vmatpush1.msra.mxu0 0.0
  %1697 = vmatprep.subr.mxu0 0.0
  %1698 = vmatpush1.msra.mxu0 0.0
  %1699 = vmatprep.subr.mxu0 0.0
  %1700 = vmatpush1.msra.mxu0 0.0
  %1701 = vmatprep.subr.mxu0 0.0
  %1702 = vmatpush1.msra.mxu0 0.0
  %1703 = vmatprep.subr.mxu0 0.0
  %1704 = vmatpush1.msra.mxu0 0.0
  %1705 = vmatprep.subr.mxu0 0.0
  %1706 = vmatpush1.msra.mxu0 0.0
  %1707 = vmatprep.subr.mxu0 0.0
  %1708 = vmatpush1.msra.mxu0 0.0
  %1709 = vmatprep.subr.mxu0 0.0
  %1710 = vmatpush1.msra.mxu0 0.0
  %1711 = vmatprep.subr.mxu0 0.0
  %1712 = vmatpush1.msra.mxu0 0.0
  %1713 = vmatprep.subr.mxu0 0.0
  %1714 = vmatpush1.msra.mxu0 0.0
  %1715 = vmatprep.subr.mxu0 0.0
  %1716 = vmatpush1.msra.mxu0 0.0
  %1717 = vmatprep.subr.mxu0 0.0
  %1718 = vmatpush1.msra.mxu0 0.0
  %1719 = vmatprep.subr.mxu0 0.0
  %1720 = vmatpush1.msra.mxu0 0.0
  %1721 = vmatprep.subr.mxu0 0.0
  %1722 = vmatpush1.msra.mxu0 0.0
  %1723 = vmatprep.subr.mxu0 0.0
  %1724 = vmatpush1.msra.mxu0 0.0
  %1725 = vmatprep.subr.mxu0 0.0
  %1726 = vmatpush1.msra.mxu0 0.0
  %1727 = vmatprep.subr.mxu0 0.0
  %1728 = vmatpush1.msra.mxu0 0.0
  %1729 = vmatprep.subr.mxu0 0.0
  %1730 = vmatpush1.msra.mxu0 0.0
  %1731 = vmatprep.subr.mxu0 0.0
  %1732 = vmatpush1.msra.mxu0 0.0
  %1733 = vmatprep.mubr.f32.mxu0 0.0
  %1734 = vmatmul.mubr.f32.gmra.mrb[0].mxu0 %v1658
  %v1735 = vpop.f32.mrb[0].mxu0
  %v1736 = vadd.f32 0.0, %v1735
  %v1737 = vpop.f32.mrb[0].mxu0
  %1738 = vmatprep.mubr.f32.mxu0 0.0
  %1739 = vmatmul.mubr.f32.gmra.mrb[0].mxu0 %v1661
  %v1740 = vpop.f32.mrb[0].mxu0
  %v1741 = vadd.f32 0.0, %v1740
  %v1742 = vpop.f32.mrb[0].mxu0
  %1743 = vmatprep.mubr.f32.mxu0 0.0
  %1744 = vmatmul.mubr.f32.gmra.mrb[0].mxu0 %v1664
  %v1745 = vpop.f32.mrb[0].mxu0
  %v1746 = vadd.f32 0.0, %v1745
  %v1747 = vpop.f32.mrb[0].mxu0
  %1748 = vmatprep.mubr.f32.mxu0 0.0
  %1749 = vmatmul.mubr.f32.gmra.mrb[0].mxu0 %v1667
  %v1750 = vpop.f32.mrb[0].mxu0
  %v1751 = vadd.f32 0.0, %v1750
  %v1752 = vpop.f32.mrb[0].mxu0
  %1753 = vdwg.mxu0
  %v1754 = vsel %vm1015, %v1736, -inf
  %1755 = vmax.xlane.f32.xlu0 %v1754
  %v1756 = vpop.xlane.xlu0 %1755
  %v1757 = vsel %vm1015, %v1741, -inf
  %1758 = vmax.xlane.f32.xlu0 %v1757
  %v1759 = vpop.xlane.xlu0 %1758
  %v1760 = vsel %vm1015, %v1746, -inf
  %1761 = vmax.xlane.f32.xlu0 %v1760
  %v1762 = vpop.xlane.xlu0 %1761
  %v1763 = vsel %vm1015, %v1751, -inf
  %1764 = vmax.xlane.f32.xlu0 %v1763
  %v1765 = vpop.xlane.xlu0 %1764
  %v1766 = vsub.f32 %v1736, %v1756
  %v1767 = vsub.f32 %v1741, %v1759
  %v1768 = vsub.f32 %v1746, %v1762
  %v1769 = vsub.f32 %v1751, %v1765
  %v1770 = vmul.f32 %v1766, 1.442695
  %v1771 = vpow.pop %v1770
  %v1772 = vmul.f32 %v1767, 1.442695
  %v1773 = vpow.pop %v1772
  %v1774 = vmul.f32 %v1768, 1.442695
  %v1775 = vpow.pop %v1774
  %v1776 = vmul.f32 %v1769, 1.442695
  %v1777 = vpow.pop %v1776
  %v1778 = vsel %vm1015, %v1771, 0.0
  %1779 = vadd.xlane.f32.xlu0 %v1778
  %v1780 = vpop.xlane.xlu0 %1779
  %v1781 = vsel %vm1015, %v1773, 0.0
  %1782 = vadd.xlane.f32.xlu0 %v1781
  %v1783 = vpop.xlane.xlu0 %1782
  %v1784 = vsel %vm1015, %v1775, 0.0
  %1785 = vadd.xlane.f32.xlu0 %v1784
  %v1786 = vpop.xlane.xlu0 %1785
  %v1787 = vsel %vm1015, %v1777, 0.0
  %1788 = vadd.xlane.f32.xlu0 %v1787
  %v1789 = vpop.xlane.xlu0 %1788
  %v1790 = vrcp.pop %v1780
  %v1791 = vmul.f32 %v1771, %v1790
  %v1792 = vrcp.pop %v1783
  %v1793 = vmul.f32 %v1773, %v1792
  %v1794 = vrcp.pop %v1786
  %v1795 = vmul.f32 %v1775, %v1794
  %v1796 = vrcp.pop %v1789
  %v1797 = vmul.f32 %v1777, %v1796
  %v1799 = vsel %vm1015, %v1791, 0
  %v1802 = vsel %vm1015, %v1793, 0
  %v1805 = vsel %vm1015, %v1795, 0
  %v1808 = vsel %vm1015, %v1797, 0
  %1810 = vmatprep.subr.mxu0 0.0
  %1811 = vmatpush1.msra.mxu0 %v1074
  %1812 = vmatprep.subr.mxu0 0.0
  %1813 = vmatpush1.msra.mxu0 0.0
  %1814 = vmatprep.subr.mxu0 0.0
  %1815 = vmatpush1.msra.mxu0 0.0
  %1816 = vmatprep.subr.mxu0 0.0
  %1817 = vmatpush1.msra.mxu0 0.0
  %1818 = vmatprep.subr.mxu0 0.0
  %1819 = vmatpush1.msra.mxu0 0.0
  %1820 = vmatprep.subr.mxu0 0.0
  %1821 = vmatpush1.msra.mxu0 0.0
  %1822 = vmatprep.subr.mxu0 0.0
  %1823 = vmatpush1.msra.mxu0 0.0
  %1824 = vmatprep.subr.mxu0 0.0
  %1825 = vmatpush1.msra.mxu0 0.0
  %1826 = vmatprep.subr.mxu0 0.0
  %1827 = vmatpush1.msra.mxu0 0.0
  %1828 = vmatprep.subr.mxu0 0.0
  %1829 = vmatpush1.msra.mxu0 0.0
  %1830 = vmatprep.subr.mxu0 0.0
  %1831 = vmatpush1.msra.mxu0 0.0
  %1832 = vmatprep.subr.mxu0 0.0
  %1833 = vmatpush1.msra.mxu0 0.0
  %1834 = vmatprep.subr.mxu0 0.0
  %1835 = vmatpush1.msra.mxu0 0.0
  %1836 = vmatprep.subr.mxu0 0.0
  %1837 = vmatpush1.msra.mxu0 0.0
  %1838 = vmatprep.subr.mxu0 0.0
  %1839 = vmatpush1.msra.mxu0 0.0
  %1840 = vmatprep.subr.mxu0 0.0
  %1841 = vmatpush1.msra.mxu0 0.0
  %1842 = vmatprep.subr.mxu0 0.0
  %1843 = vmatpush1.msra.mxu0 0.0
  %1844 = vmatprep.subr.mxu0 0.0
  %1845 = vmatpush1.msra.mxu0 0.0
  %1846 = vmatprep.subr.mxu0 0.0
  %1847 = vmatpush1.msra.mxu0 0.0
  %1848 = vmatprep.subr.mxu0 0.0
  %1849 = vmatpush1.msra.mxu0 0.0
  %1850 = vmatprep.subr.mxu0 0.0
  %1851 = vmatpush1.msra.mxu0 0.0
  %1852 = vmatprep.subr.mxu0 0.0
  %1853 = vmatpush1.msra.mxu0 0.0
  %1854 = vmatprep.subr.mxu0 0.0
  %1855 = vmatpush1.msra.mxu0 0.0
  %1856 = vmatprep.subr.mxu0 0.0
  %1857 = vmatpush1.msra.mxu0 0.0
  %1858 = vmatprep.subr.mxu0 0.0
  %1859 = vmatpush1.msra.mxu0 0.0
  %1860 = vmatprep.subr.mxu0 0.0
  %1861 = vmatpush1.msra.mxu0 0.0
  %1862 = vmatprep.subr.mxu0 0.0
  %1863 = vmatpush1.msra.mxu0 0.0
  %1864 = vmatprep.subr.mxu0 0.0
  %1865 = vmatpush1.msra.mxu0 0.0
  %1866 = vmatprep.subr.mxu0 0.0
  %1867 = vmatpush1.msra.mxu0 0.0
  %1868 = vmatprep.subr.mxu0 0.0
  %1869 = vmatpush1.msra.mxu0 0.0
  %1870 = vmatprep.subr.mxu0 0.0
  %1871 = vmatpush1.msra.mxu0 0.0
  %1872 = vmatprep.subr.mxu0 0.0
  %1873 = vmatpush1.msra.mxu0 0.0
  %1874 = vmatprep.mubr.f32.mxu0 0.0
  %1875 = vmatmul.mubr.f32.gmra.mrb[0].mxu0 %v1799
  %v1876 = vpop.f32.mrb[0].mxu0
  %v1877 = vadd.f32 0.0, %v1876
  %v1878 = vpop.f32.mrb[0].mxu0
  %1879 = vmatprep.mubr.f32.mxu0 0.0
  %1880 = vmatmul.mubr.f32.gmra.mrb[0].mxu0 %v1802
  %v1881 = vpop.f32.mrb[0].mxu0
  %v1882 = vadd.f32 0.0, %v1881
  %v1883 = vpop.f32.mrb[0].mxu0
  %1884 = vmatprep.mubr.f32.mxu0 0.0
  %1885 = vmatmul.mubr.f32.gmra.mrb[0].mxu0 %v1805
  %v1886 = vpop.f32.mrb[0].mxu0
  %v1887 = vadd.f32 0.0, %v1886
  %v1888 = vpop.f32.mrb[0].mxu0
  %1889 = vmatprep.mubr.f32.mxu0 0.0
  %1890 = vmatmul.mubr.f32.gmra.mrb[0].mxu0 %v1808
  %v1891 = vpop.f32.mrb[0].mxu0
  %v1892 = vadd.f32 0.0, %v1891
  %v1893 = vpop.f32.mrb[0].mxu0
  %1894 = vdwg.mxu0
  %v1895 = vmul.f32 %v1877, %v825
  %v1896 = vmul.f32 %v1882, %v830
  %v1897 = vmul.f32 %v1887, %v835
  %v1898 = vmul.f32 %v1892, %v840
  %v1900 = vsel %vm374, %v1895, 0
  %v1903 = vsel %vm374, %v1896, 0
  %v1906 = vsel %vm374, %v1897, 0
  %v1909 = vsel %vm374, %v1898, 0
  %1911 = vmatprep.subr.mxu0 0.0
  %1912 = vmatpush1.msra.mxu0 %v852
  %1913 = vmatprep.subr.mxu0 0.0
  %1914 = vmatpush1.msra.mxu0 %v853
  %1915 = vmatprep.subr.mxu0 0.0
  %1916 = vmatpush1.msra.mxu0 %v854
  %1917 = vmatprep.subr.mxu0 0.0
  %1918 = vmatpush1.msra.mxu0 %v855
  %1919 = vmatprep.subr.mxu0 0.0
  %1920 = vmatpush1.msra.mxu0 %v856
  %1921 = vmatprep.subr.mxu0 0.0
  %1922 = vmatpush1.msra.mxu0 %v857
  %1923 = vmatprep.subr.mxu0 0.0
  %1924 = vmatpush1.msra.mxu0 %v858
  %1925 = vmatprep.subr.mxu0 0.0
  %1926 = vmatpush1.msra.mxu0 %v859
  %1927 = vmatprep.subr.mxu0 0.0
  %1928 = vmatpush1.msra.mxu0 0.0
  %1929 = vmatprep.subr.mxu0 0.0
  %1930 = vmatpush1.msra.mxu0 0.0
  %1931 = vmatprep.subr.mxu0 0.0
  %1932 = vmatpush1.msra.mxu0 0.0
  %1933 = vmatprep.subr.mxu0 0.0
  %1934 = vmatpush1.msra.mxu0 0.0
  %1935 = vmatprep.subr.mxu0 0.0
  %1936 = vmatpush1.msra.mxu0 0.0
  %1937 = vmatprep.subr.mxu0 0.0
  %1938 = vmatpush1.msra.mxu0 0.0
  %1939 = vmatprep.subr.mxu0 0.0
  %1940 = vmatpush1.msra.mxu0 0.0
  %1941 = vmatprep.subr.mxu0 0.0
  %1942 = vmatpush1.msra.mxu0 0.0
  %1943 = vmatprep.subr.mxu0 0.0
  %1944 = vmatpush1.msra.mxu0 0.0
  %1945 = vmatprep.subr.mxu0 0.0
  %1946 = vmatpush1.msra.mxu0 0.0
  %1947 = vmatprep.subr.mxu0 0.0
  %1948 = vmatpush1.msra.mxu0 0.0
  %1949 = vmatprep.subr.mxu0 0.0
  %1950 = vmatpush1.msra.mxu0 0.0
  %1951 = vmatprep.subr.mxu0 0.0
  %1952 = vmatpush1.msra.mxu0 0.0
  %1953 = vmatprep.subr.mxu0 0.0
  %1954 = vmatpush1.msra.mxu0 0.0
  %1955 = vmatprep.subr.mxu0 0.0
  %1956 = vmatpush1.msra.mxu0 0.0
  %1957 = vmatprep.subr.mxu0 0.0
  %1958 = vmatpush1.msra.mxu0 0.0
  %1959 = vmatprep.subr.mxu0 0.0
  %1960 = vmatpush1.msra.mxu0 0.0
  %1961 = vmatprep.subr.mxu0 0.0
  %1962 = vmatpush1.msra.mxu0 0.0
  %1963 = vmatprep.subr.mxu0 0.0
  %1964 = vmatpush1.msra.mxu0 0.0
  %1965 = vmatprep.subr.mxu0 0.0
  %1966 = vmatpush1.msra.mxu0 0.0
  %1967 = vmatprep.subr.mxu0 0.0
  %1968 = vmatpush1.msra.mxu0 0.0
  %1969 = vmatprep.subr.mxu0 0.0
  %1970 = vmatpush1.msra.mxu0 0.0
  %1971 = vmatprep.subr.mxu0 0.0
  %1972 = vmatpush1.msra.mxu0 0.0
  %1973 = vmatprep.subr.mxu0 0.0
  %1974 = vmatpush1.msra.mxu0 0.0
  %1975 = vmatprep.mubr.f32.mxu0 0.0
  %1976 = vmatmul.mubr.f32.gmra.mrb[0].mxu0 %v1900
  %v1977 = vpop.f32.mrb[0].mxu0
  %v1978 = vadd.f32 0.0, %v1977
  %v1979 = vpop.f32.mrb[0].mxu0
  %1980 = vmatprep.mubr.f32.mxu0 0.0
  %1981 = vmatmul.mubr.f32.gmra.mrb[0].mxu0 %v1903
  %v1982 = vpop.f32.mrb[0].mxu0
  %v1983 = vadd.f32 0.0, %v1982
  %v1984 = vpop.f32.mrb[0].mxu0
  %1985 = vmatprep.mubr.f32.mxu0 0.0
  %1986 = vmatmul.mubr.f32.gmra.mrb[0].mxu0 %v1906
  %v1987 = vpop.f32.mrb[0].mxu0
  %v1988 = vadd.f32 0.0, %v1987
  %v1989 = vpop.f32.mrb[0].mxu0
  %1990 = vmatprep.mubr.f32.mxu0 0.0
  %1991 = vmatmul.mubr.f32.gmra.mrb[0].mxu0 %v1909
  %v1992 = vpop.f32.mrb[0].mxu0
  %v1993 = vadd.f32 0.0, %v1992
  %v1994 = vpop.f32.mrb[0].mxu0
  %1995 = vdwg.mxu0
  %1996 = vrot.lane.b32.xlu0 %v627, 80
  %v1997 = vpop.permute.xlu0 %1996
  %1998 = vrot.lane.b32.xlu0 %v632, 80
  %v1999 = vpop.permute.xlu0 %1998
  %2000 = vrot.lane.b32.xlu0 %v637, 80
  %v2001 = vpop.permute.xlu0 %2000
  %2002 = vrot.lane.b32.xlu0 %v642, 80
  %v2003 = vpop.permute.xlu0 %2002
  %v2008 = vsel %vm900, %v1997, %v1630
  %v2009 = vsel %vm900, %v1999, %v1632
  %v2010 = vsel %vm900, %v2001, %v1634
  %v2011 = vsel %vm900, %v2003, %v1636
  %v2012 = vsel %vm181, %v2008, %v1263
  %v2013 = vsel %vm181, %v2009, %v1265
  %v2014 = vsel %vm181, %v2010, %v1267
  %v2015 = vsel %vm181, %v2011, %v1269
  %v2016 = vsel %vm909, %v2012, %v627
  %v2017 = vsel %vm909, %v2013, %v632
  %v2018 = vsel %vm909, %v2014, %v637
  %v2019 = vsel %vm909, %v2015, %v642
  %v2020 = vmul.f32 %v2016, %v720
  %v2021 = vmul.f32 %v2017, %v725
  %v2022 = vmul.f32 %v2018, %v730
  %v2023 = vmul.f32 %v2019, %v735
  %v2025 = vsel %vm374, %v2020, 0
  %v2028 = vsel %vm374, %v2021, 0
  %v2031 = vsel %vm374, %v2022, 0
  %v2034 = vsel %vm374, %v2023, 0
  %2036 = vmatprep.subr.mxu0 0.0
  %2037 = vmatpush1.msra.mxu0 %v843
  %2038 = vmatprep.subr.mxu0 0.0
  %2039 = vmatpush1.msra.mxu0 %v844
  %2040 = vmatprep.subr.mxu0 0.0
  %2041 = vmatpush1.msra.mxu0 %v845
  %2042 = vmatprep.subr.mxu0 0.0
  %2043 = vmatpush1.msra.mxu0 %v846
  %2044 = vmatprep.subr.mxu0 0.0
  %2045 = vmatpush1.msra.mxu0 %v847
  %2046 = vmatprep.subr.mxu0 0.0
  %2047 = vmatpush1.msra.mxu0 %v848
  %2048 = vmatprep.subr.mxu0 0.0
  %2049 = vmatpush1.msra.mxu0 %v849
  %2050 = vmatprep.subr.mxu0 0.0
  %2051 = vmatpush1.msra.mxu0 %v850
  %2052 = vmatprep.subr.mxu0 0.0
  %2053 = vmatpush1.msra.mxu0 0.0
  %2054 = vmatprep.subr.mxu0 0.0
  %2055 = vmatpush1.msra.mxu0 0.0
  %2056 = vmatprep.subr.mxu0 0.0
  %2057 = vmatpush1.msra.mxu0 0.0
  %2058 = vmatprep.subr.mxu0 0.0
  %2059 = vmatpush1.msra.mxu0 0.0
  %2060 = vmatprep.subr.mxu0 0.0
  %2061 = vmatpush1.msra.mxu0 0.0
  %2062 = vmatprep.subr.mxu0 0.0
  %2063 = vmatpush1.msra.mxu0 0.0
  %2064 = vmatprep.subr.mxu0 0.0
  %2065 = vmatpush1.msra.mxu0 0.0
  %2066 = vmatprep.subr.mxu0 0.0
  %2067 = vmatpush1.msra.mxu0 0.0
  %2068 = vmatprep.subr.mxu0 0.0
  %2069 = vmatpush1.msra.mxu0 0.0
  %2070 = vmatprep.subr.mxu0 0.0
  %2071 = vmatpush1.msra.mxu0 0.0
  %2072 = vmatprep.subr.mxu0 0.0
  %2073 = vmatpush1.msra.mxu0 0.0
  %2074 = vmatprep.subr.mxu0 0.0
  %2075 = vmatpush1.msra.mxu0 0.0
  %2076 = vmatprep.subr.mxu0 0.0
  %2077 = vmatpush1.msra.mxu0 0.0
  %2078 = vmatprep.subr.mxu0 0.0
  %2079 = vmatpush1.msra.mxu0 0.0
  %2080 = vmatprep.subr.mxu0 0.0
  %2081 = vmatpush1.msra.mxu0 0.0
  %2082 = vmatprep.subr.mxu0 0.0
  %2083 = vmatpush1.msra.mxu0 0.0
  %2084 = vmatprep.subr.mxu0 0.0
  %2085 = vmatpush1.msra.mxu0 0.0
  %2086 = vmatprep.subr.mxu0 0.0
  %2087 = vmatpush1.msra.mxu0 0.0
  %2088 = vmatprep.subr.mxu0 0.0
  %2089 = vmatpush1.msra.mxu0 0.0
  %2090 = vmatprep.subr.mxu0 0.0
  %2091 = vmatpush1.msra.mxu0 0.0
  %2092 = vmatprep.subr.mxu0 0.0
  %2093 = vmatpush1.msra.mxu0 0.0
  %2094 = vmatprep.subr.mxu0 0.0
  %2095 = vmatpush1.msra.mxu0 0.0
  %2096 = vmatprep.subr.mxu0 0.0
  %2097 = vmatpush1.msra.mxu0 0.0
  %2098 = vmatprep.subr.mxu0 0.0
  %2099 = vmatpush1.msra.mxu0 0.0
  %2100 = vmatprep.mubr.f32.mxu0 0.0
  %2101 = vmatmul.mubr.f32.gmra.mrb[0].mxu0 %v2025
  %v2102 = vpop.f32.mrb[0].mxu0
  %v2103 = vadd.f32 0.0, %v2102
  %v2104 = vpop.f32.mrb[0].mxu0
  %2105 = vmatprep.mubr.f32.mxu0 0.0
  %2106 = vmatmul.mubr.f32.gmra.mrb[0].mxu0 %v2028
  %v2107 = vpop.f32.mrb[0].mxu0
  %v2108 = vadd.f32 0.0, %v2107
  %v2109 = vpop.f32.mrb[0].mxu0
  %2110 = vmatprep.mubr.f32.mxu0 0.0
  %2111 = vmatmul.mubr.f32.gmra.mrb[0].mxu0 %v2031
  %v2112 = vpop.f32.mrb[0].mxu0
  %v2113 = vadd.f32 0.0, %v2112
  %v2114 = vpop.f32.mrb[0].mxu0
  %2115 = vmatprep.mubr.f32.mxu0 0.0
  %2116 = vmatmul.mubr.f32.gmra.mrb[0].mxu0 %v2034
  %v2117 = vpop.f32.mrb[0].mxu0
  %v2118 = vadd.f32 0.0, %v2117
  %v2119 = vpop.f32.mrb[0].mxu0
  %2120 = vdwg.mxu0
  %v2121 = vsel %vm1015, %v2103, -inf
  %2122 = vmax.xlane.f32.xlu0 %v2121
  %v2123 = vpop.xlane.xlu0 %2122
  %v2124 = vsel %vm1015, %v2108, -inf
  %2125 = vmax.xlane.f32.xlu0 %v2124
  %v2126 = vpop.xlane.xlu0 %2125
  %v2127 = vsel %vm1015, %v2113, -inf
  %2128 = vmax.xlane.f32.xlu0 %v2127
  %v2129 = vpop.xlane.xlu0 %2128
  %v2130 = vsel %vm1015, %v2118, -inf
  %2131 = vmax.xlane.f32.xlu0 %v2130
  %v2132 = vpop.xlane.xlu0 %2131
  %v2133 = vsub.f32 %v2103, %v2123
  %v2134 = vsub.f32 %v2108, %v2126
  %v2135 = vsub.f32 %v2113, %v2129
  %v2136 = vsub.f32 %v2118, %v2132
  %v2137 = vmul.f32 %v2133, 1.442695
  %v2138 = vpow.pop %v2137
  %v2139 = vmul.f32 %v2134, 1.442695
  %v2140 = vpow.pop %v2139
  %v2141 = vmul.f32 %v2135, 1.442695
  %v2142 = vpow.pop %v2141
  %v2143 = vmul.f32 %v2136, 1.442695
  %v2144 = vpow.pop %v2143
  %v2145 = vsel %vm1015, %v2138, 0.0
  %2146 = vadd.xlane.f32.xlu0 %v2145
  %v2147 = vpop.xlane.xlu0 %2146
  %v2148 = vsel %vm1015, %v2140, 0.0
  %2149 = vadd.xlane.f32.xlu0 %v2148
  %v2150 = vpop.xlane.xlu0 %2149
  %v2151 = vsel %vm1015, %v2142, 0.0
  %2152 = vadd.xlane.f32.xlu0 %v2151
  %v2153 = vpop.xlane.xlu0 %2152
  %v2154 = vsel %vm1015, %v2144, 0.0
  %2155 = vadd.xlane.f32.xlu0 %v2154
  %v2156 = vpop.xlane.xlu0 %2155
  %v2157 = vrcp.pop %v2147
  %v2158 = vmul.f32 %v2138, %v2157
  %v2159 = vrcp.pop %v2150
  %v2160 = vmul.f32 %v2140, %v2159
  %v2161 = vrcp.pop %v2153
  %v2162 = vmul.f32 %v2142, %v2161
  %v2163 = vrcp.pop %v2156
  %v2164 = vmul.f32 %v2144, %v2163
  %v2166 = vsel %vm1015, %v2158, 0
  %v2169 = vsel %vm1015, %v2160, 0
  %v2172 = vsel %vm1015, %v2162, 0
  %v2175 = vsel %vm1015, %v2164, 0
  %2177 = vmatprep.subr.mxu0 0.0
  %2178 = vmatpush1.msra.mxu0 %v1074
  %2179 = vmatprep.subr.mxu0 0.0
  %2180 = vmatpush1.msra.mxu0 0.0
  %2181 = vmatprep.subr.mxu0 0.0
  %2182 = vmatpush1.msra.mxu0 0.0
  %2183 = vmatprep.subr.mxu0 0.0
  %2184 = vmatpush1.msra.mxu0 0.0
  %2185 = vmatprep.subr.mxu0 0.0
  %2186 = vmatpush1.msra.mxu0 0.0
  %2187 = vmatprep.subr.mxu0 0.0
  %2188 = vmatpush1.msra.mxu0 0.0
  %2189 = vmatprep.subr.mxu0 0.0
  %2190 = vmatpush1.msra.mxu0 0.0
  %2191 = vmatprep.subr.mxu0 0.0
  %2192 = vmatpush1.msra.mxu0 0.0
  %2193 = vmatprep.subr.mxu0 0.0
  %2194 = vmatpush1.msra.mxu0 0.0
  %2195 = vmatprep.subr.mxu0 0.0
  %2196 = vmatpush1.msra.mxu0 0.0
  %2197 = vmatprep.subr.mxu0 0.0
  %2198 = vmatpush1.msra.mxu0 0.0
  %2199 = vmatprep.subr.mxu0 0.0
  %2200 = vmatpush1.msra.mxu0 0.0
  %2201 = vmatprep.subr.mxu0 0.0
  %2202 = vmatpush1.msra.mxu0 0.0
  %2203 = vmatprep.subr.mxu0 0.0
  %2204 = vmatpush1.msra.mxu0 0.0
  %2205 = vmatprep.subr.mxu0 0.0
  %2206 = vmatpush1.msra.mxu0 0.0
  %2207 = vmatprep.subr.mxu0 0.0
  %2208 = vmatpush1.msra.mxu0 0.0
  %2209 = vmatprep.subr.mxu0 0.0
  %2210 = vmatpush1.msra.mxu0 0.0
  %2211 = vmatprep.subr.mxu0 0.0
  %2212 = vmatpush1.msra.mxu0 0.0
  %2213 = vmatprep.subr.mxu0 0.0
  %2214 = vmatpush1.msra.mxu0 0.0
  %2215 = vmatprep.subr.mxu0 0.0
  %2216 = vmatpush1.msra.mxu0 0.0
  %2217 = vmatprep.subr.mxu0 0.0
  %2218 = vmatpush1.msra.mxu0 0.0
  %2219 = vmatprep.subr.mxu0 0.0
  %2220 = vmatpush1.msra.mxu0 0.0
  %2221 = vmatprep.subr.mxu0 0.0
  %2222 = vmatpush1.msra.mxu0 0.0
  %2223 = vmatprep.subr.mxu0 0.0
  %2224 = vmatpush1.msra.mxu0 0.0
  %2225 = vmatprep.subr.mxu0 0.0
  %2226 = vmatpush1.msra.mxu0 0.0
  %2227 = vmatprep.subr.mxu0 0.0
  %2228 = vmatpush1.msra.mxu0 0.0
  %2229 = vmatprep.subr.mxu0 0.0
  %2230 = vmatpush1.msra.mxu0 0.0
  %2231 = vmatprep.subr.mxu0 0.0
  %2232 = vmatpush1.msra.mxu0 0.0
  %2233 = vmatprep.subr.mxu0 0.0
  %2234 = vmatpush1.msra.mxu0 0.0
  %2235 = vmatprep.subr.mxu0 0.0
  %2236 = vmatpush1.msra.mxu0 0.0
  %2237 = vmatprep.subr.mxu0 0.0
  %2238 = vmatpush1.msra.mxu0 0.0
  %2239 = vmatprep.subr.mxu0 0.0
  %2240 = vmatpush1.msra.mxu0 0.0
  %2241 = vmatprep.mubr.f32.mxu0 0.0
  %2242 = vmatmul.mubr.f32.gmra.mrb[0].mxu0 %v2166
  %v2243 = vpop.f32.mrb[0].mxu0
  %v2244 = vadd.f32 0.0, %v2243
  %v2245 = vpop.f32.mrb[0].mxu0
  %2246 = vmatprep.mubr.f32.mxu0 0.0
  %2247 = vmatmul.mubr.f32.gmra.mrb[0].mxu0 %v2169
  %v2248 = vpop.f32.mrb[0].mxu0
  %v2249 = vadd.f32 0.0, %v2248
  %v2250 = vpop.f32.mrb[0].mxu0
  %2251 = vmatprep.mubr.f32.mxu0 0.0
  %2252 = vmatmul.mubr.f32.gmra.mrb[0].mxu0 %v2172
  %v2253 = vpop.f32.mrb[0].mxu0
  %v2254 = vadd.f32 0.0, %v2253
  %v2255 = vpop.f32.mrb[0].mxu0
  %2256 = vmatprep.mubr.f32.mxu0 0.0
  %2257 = vmatmul.mubr.f32.gmra.mrb[0].mxu0 %v2175
  %v2258 = vpop.f32.mrb[0].mxu0
  %v2259 = vadd.f32 0.0, %v2258
  %v2260 = vpop.f32.mrb[0].mxu0
  %2261 = vdwg.mxu0
  %v2262 = vmul.f32 %v2244, %v825
  %v2263 = vmul.f32 %v2249, %v830
  %v2264 = vmul.f32 %v2254, %v835
  %v2265 = vmul.f32 %v2259, %v840
  %v2267 = vsel %vm374, %v2262, 0
  %v2270 = vsel %vm374, %v2263, 0
  %v2273 = vsel %vm374, %v2264, 0
  %v2276 = vsel %vm374, %v2265, 0
  %2278 = vmatprep.subr.mxu0 0.0
  %2279 = vmatpush1.msra.mxu0 %v852
  %2280 = vmatprep.subr.mxu0 0.0
  %2281 = vmatpush1.msra.mxu0 %v853
  %2282 = vmatprep.subr.mxu0 0.0
  %2283 = vmatpush1.msra.mxu0 %v854
  %2284 = vmatprep.subr.mxu0 0.0
  %2285 = vmatpush1.msra.mxu0 %v855
  %2286 = vmatprep.subr.mxu0 0.0
  %2287 = vmatpush1.msra.mxu0 %v856
  %2288 = vmatprep.subr.mxu0 0.0
  %2289 = vmatpush1.msra.mxu0 %v857
  %2290 = vmatprep.subr.mxu0 0.0
  %2291 = vmatpush1.msra.mxu0 %v858
  %2292 = vmatprep.subr.mxu0 0.0
  %2293 = vmatpush1.msra.mxu0 %v859
  %2294 = vmatprep.subr.mxu0 0.0
  %2295 = vmatpush1.msra.mxu0 0.0
  %2296 = vmatprep.subr.mxu0 0.0
  %2297 = vmatpush1.msra.mxu0 0.0
  %2298 = vmatprep.subr.mxu0 0.0
  %2299 = vmatpush1.msra.mxu0 0.0
  %2300 = vmatprep.subr.mxu0 0.0
  %2301 = vmatpush1.msra.mxu0 0.0
  %2302 = vmatprep.subr.mxu0 0.0
  %2303 = vmatpush1.msra.mxu0 0.0
  %2304 = vmatprep.subr.mxu0 0.0
  %2305 = vmatpush1.msra.mxu0 0.0
  %2306 = vmatprep.subr.mxu0 0.0
  %2307 = vmatpush1.msra.mxu0 0.0
  %2308 = vmatprep.subr.mxu0 0.0
  %2309 = vmatpush1.msra.mxu0 0.0
  %2310 = vmatprep.subr.mxu0 0.0
  %2311 = vmatpush1.msra.mxu0 0.0
  %2312 = vmatprep.subr.mxu0 0.0
  %2313 = vmatpush1.msra.mxu0 0.0
  %2314 = vmatprep.subr.mxu0 0.0
  %2315 = vmatpush1.msra.mxu0 0.0
  %2316 = vmatprep.subr.mxu0 0.0
  %2317 = vmatpush1.msra.mxu0 0.0
  %2318 = vmatprep.subr.mxu0 0.0
  %2319 = vmatpush1.msra.mxu0 0.0
  %2320 = vmatprep.subr.mxu0 0.0
  %2321 = vmatpush1.msra.mxu0 0.0
  %2322 = vmatprep.subr.mxu0 0.0
  %2323 = vmatpush1.msra.mxu0 0.0
  %2324 = vmatprep.subr.mxu0 0.0
  %2325 = vmatpush1.msra.mxu0 0.0
  %2326 = vmatprep.subr.mxu0 0.0
  %2327 = vmatpush1.msra.mxu0 0.0
  %2328 = vmatprep.subr.mxu0 0.0
  %2329 = vmatpush1.msra.mxu0 0.0
  %2330 = vmatprep.subr.mxu0 0.0
  %2331 = vmatpush1.msra.mxu0 0.0
  %2332 = vmatprep.subr.mxu0 0.0
  %2333 = vmatpush1.msra.mxu0 0.0
  %2334 = vmatprep.subr.mxu0 0.0
  %2335 = vmatpush1.msra.mxu0 0.0
  %2336 = vmatprep.subr.mxu0 0.0
  %2337 = vmatpush1.msra.mxu0 0.0
  %2338 = vmatprep.subr.mxu0 0.0
  %2339 = vmatpush1.msra.mxu0 0.0
  %2340 = vmatprep.subr.mxu0 0.0
  %2341 = vmatpush1.msra.mxu0 0.0
  %2342 = vmatprep.mubr.f32.mxu0 0.0
  %2343 = vmatmul.mubr.f32.gmra.mrb[0].mxu0 %v2267
  %v2344 = vpop.f32.mrb[0].mxu0
  %v2345 = vadd.f32 0.0, %v2344
  %v2346 = vpop.f32.mrb[0].mxu0
  %2347 = vmatprep.mubr.f32.mxu0 0.0
  %2348 = vmatmul.mubr.f32.gmra.mrb[0].mxu0 %v2270
  %v2349 = vpop.f32.mrb[0].mxu0
  %v2350 = vadd.f32 0.0, %v2349
  %v2351 = vpop.f32.mrb[0].mxu0
  %2352 = vmatprep.mubr.f32.mxu0 0.0
  %2353 = vmatmul.mubr.f32.gmra.mrb[0].mxu0 %v2273
  %v2354 = vpop.f32.mrb[0].mxu0
  %v2355 = vadd.f32 0.0, %v2354
  %v2356 = vpop.f32.mrb[0].mxu0
  %2357 = vmatprep.mubr.f32.mxu0 0.0
  %2358 = vmatmul.mubr.f32.gmra.mrb[0].mxu0 %v2276
  %v2359 = vpop.f32.mrb[0].mxu0
  %v2360 = vadd.f32 0.0, %v2359
  %v2361 = vpop.f32.mrb[0].mxu0
  %2362 = vdwg.mxu0
  %2367 = vrot.lane.b32.xlu0 %v1611, 16
  %v2368 = vpop.permute.xlu0 %2367
  %2369 = vrot.lane.b32.xlu0 %v1616, 16
  %v2370 = vpop.permute.xlu0 %2369
  %2371 = vrot.lane.b32.xlu0 %v1621, 16
  %v2372 = vpop.permute.xlu0 %2371
  %2373 = vrot.lane.b32.xlu0 %v1626, 16
  %v2374 = vpop.permute.xlu0 %2373
  %2383 = vrot.lane.b32.xlu0 %v1978, 32
  %v2384 = vpop.permute.xlu0 %2383
  %2385 = vrot.lane.b32.xlu0 %v1983, 32
  %v2386 = vpop.permute.xlu0 %2385
  %2387 = vrot.lane.b32.xlu0 %v1988, 32
  %v2388 = vpop.permute.xlu0 %2387
  %2389 = vrot.lane.b32.xlu0 %v1993, 32
  %v2390 = vpop.permute.xlu0 %2389
  %2399 = vrot.lane.b32.xlu0 %v2345, 48
  %v2400 = vpop.permute.xlu0 %2399
  %2401 = vrot.lane.b32.xlu0 %v2350, 48
  %v2402 = vpop.permute.xlu0 %2401
  %2403 = vrot.lane.b32.xlu0 %v2355, 48
  %v2404 = vpop.permute.xlu0 %2403
  %2405 = vrot.lane.b32.xlu0 %v2360, 48
  %v2406 = vpop.permute.xlu0 %2405
  %v2411 = vsel %vm900, %v1244, %v2368
  %v2412 = vsel %vm900, %v1249, %v2370
  %v2413 = vsel %vm900, %v1254, %v2372
  %v2414 = vsel %vm900, %v1259, %v2374
  %v2415 = vsel %vm181, %v2411, %v2384
  %v2416 = vsel %vm181, %v2412, %v2386
  %v2417 = vsel %vm181, %v2413, %v2388
  %v2418 = vsel %vm181, %v2414, %v2390
  %v2419 = vsel %vm909, %v2415, %v2400
  %v2420 = vsel %vm909, %v2416, %v2402
  %v2421 = vsel %vm909, %v2417, %v2404
  %v2422 = vsel %vm909, %v2418, %v2406
  %v2423 = vld [vmem:[%s16] sm:$0xff]
  %v2424 = vld [vmem:[%s16 + $0x8] sm:$0xff]
  %v2425 = vld [vmem:[%s16 + $0x10] sm:$0xff]
  %v2426 = vld [vmem:[%s16 + $0x18] sm:$0xff]
  %v2427 = vld [vmem:[%s16 + $0x20] sm:$0xff]
  %v2428 = vld [vmem:[%s16 + $0x28] sm:$0xff]
  %v2429 = vld [vmem:[%s16 + $0x30] sm:$0xff]
  %v2430 = vld [vmem:[%s16 + $0x38] sm:$0xff]
  %v2431 = vld [vmem:[%s16 + $0x40] sm:$0xff]
  %v2432 = vld [vmem:[%s16 + $0x48] sm:$0xff]
  %v2433 = vld [vmem:[%s16 + $0x50] sm:$0xff]
  %v2434 = vld [vmem:[%s16 + $0x58] sm:$0xff]
  %v2435 = vld [vmem:[%s16 + $0x60] sm:$0xff]
  %v2436 = vld [vmem:[%s16 + $0x68] sm:$0xff]
  %v2437 = vld [vmem:[%s16 + $0x70] sm:$0xff]
  %v2438 = vld [vmem:[%s16 + $0x78] sm:$0xff]
  %v2439 = vld [vmem:[%s17] sm:$0x3]
  %v2441 = vlaneseq
  %v2442 = vshrl.u32 %v2441, 7
  %v2443 = vsub.s32 0, %v2442
  %v2444 = vrot.slane %v2439, %v2443
  %v2445 = vlaneseq
  %v2446 = vshrl.u32 %v2445, 7
  %v2447 = vsub.s32 1, %v2446
  %v2448 = vrot.slane %v2439, %v2447
  %v2452 = vsel %vm374, %v2419, 0
  %v2455 = vsel %vm374, %v2420, 0
  %v2458 = vsel %vm374, %v2421, 0
  %v2461 = vsel %vm374, %v2422, 0
  %2463 = vmatprep.subr.mxu0 %v2424
  %2464 = vmatpush1.msra.mxu0 %v2423
  %2465 = vmatprep.subr.mxu0 %v2426
  %2466 = vmatpush1.msra.mxu0 %v2425
  %2467 = vmatprep.subr.mxu0 %v2428
  %2468 = vmatpush1.msra.mxu0 %v2427
  %2469 = vmatprep.subr.mxu0 %v2430
  %2470 = vmatpush1.msra.mxu0 %v2429
  %2471 = vmatprep.subr.mxu0 %v2432
  %2472 = vmatpush1.msra.mxu0 %v2431
  %2473 = vmatprep.subr.mxu0 %v2434
  %2474 = vmatpush1.msra.mxu0 %v2433
  %2475 = vmatprep.subr.mxu0 %v2436
  %2476 = vmatpush1.msra.mxu0 %v2435
  %2477 = vmatprep.subr.mxu0 %v2438
  %2478 = vmatpush1.msra.mxu0 %v2437
  %2479 = vmatprep.subr.mxu0 0.0
  %2480 = vmatpush1.msra.mxu0 0.0
  %2481 = vmatprep.subr.mxu0 0.0
  %2482 = vmatpush1.msra.mxu0 0.0
  %2483 = vmatprep.subr.mxu0 0.0
  %2484 = vmatpush1.msra.mxu0 0.0
  %2485 = vmatprep.subr.mxu0 0.0
  %2486 = vmatpush1.msra.mxu0 0.0
  %2487 = vmatprep.subr.mxu0 0.0
  %2488 = vmatpush1.msra.mxu0 0.0
  %2489 = vmatprep.subr.mxu0 0.0
  %2490 = vmatpush1.msra.mxu0 0.0
  %2491 = vmatprep.subr.mxu0 0.0
  %2492 = vmatpush1.msra.mxu0 0.0
  %2493 = vmatprep.subr.mxu0 0.0
  %2494 = vmatpush1.msra.mxu0 0.0
  %2495 = vmatprep.subr.mxu0 0.0
  %2496 = vmatpush1.msra.mxu0 0.0
  %2497 = vmatprep.subr.mxu0 0.0
  %2498 = vmatpush1.msra.mxu0 0.0
  %2499 = vmatprep.subr.mxu0 0.0
  %2500 = vmatpush1.msra.mxu0 0.0
  %2501 = vmatprep.subr.mxu0 0.0
  %2502 = vmatpush1.msra.mxu0 0.0
  %2503 = vmatprep.subr.mxu0 0.0
  %2504 = vmatpush1.msra.mxu0 0.0
  %2505 = vmatprep.subr.mxu0 0.0
  %2506 = vmatpush1.msra.mxu0 0.0
  %2507 = vmatprep.subr.mxu0 0.0
  %2508 = vmatpush1.msra.mxu0 0.0
  %2509 = vmatprep.subr.mxu0 0.0
  %2510 = vmatpush1.msra.mxu0 0.0
  %2511 = vmatprep.subr.mxu0 0.0
  %2512 = vmatpush1.msra.mxu0 0.0
  %2513 = vmatprep.subr.mxu0 0.0
  %2514 = vmatpush1.msra.mxu0 0.0
  %2515 = vmatprep.subr.mxu0 0.0
  %2516 = vmatpush1.msra.mxu0 0.0
  %2517 = vmatprep.subr.mxu0 0.0
  %2518 = vmatpush1.msra.mxu0 0.0
  %2519 = vmatprep.subr.mxu0 0.0
  %2520 = vmatpush1.msra.mxu0 0.0
  %2521 = vmatprep.subr.mxu0 0.0
  %2522 = vmatpush1.msra.mxu0 0.0
  %2523 = vmatprep.subr.mxu0 0.0
  %2524 = vmatpush1.msra.mxu0 0.0
  %2525 = vmatprep.subr.mxu0 0.0
  %2526 = vmatpush1.msra.mxu0 0.0
  %2527 = vmatprep.mubr.f32.mxu0 0.0
  %2528 = vmatmul.mubr.f32.gmra.mrb[0].mxu0 %v2452
  %v2529 = vpop.f32.mrb[0].mxu0
  %v2530 = vadd.f32 %v2444, %v2529
  %v2531 = vpop.f32.mrb[0].mxu0
  %v2532 = vadd.f32 %v2448, %v2531
  %2533 = vmatprep.mubr.f32.mxu0 0.0
  %2534 = vmatmul.mubr.f32.gmra.mrb[0].mxu0 %v2455
  %v2535 = vpop.f32.mrb[0].mxu0
  %v2536 = vadd.f32 %v2444, %v2535
  %v2537 = vpop.f32.mrb[0].mxu0
  %v2538 = vadd.f32 %v2448, %v2537
  %2539 = vmatprep.mubr.f32.mxu0 0.0
  %2540 = vmatmul.mubr.f32.gmra.mrb[0].mxu0 %v2458
  %v2541 = vpop.f32.mrb[0].mxu0
  %v2542 = vadd.f32 %v2444, %v2541
  %v2543 = vpop.f32.mrb[0].mxu0
  %v2544 = vadd.f32 %v2448, %v2543
  %2545 = vmatprep.mubr.f32.mxu0 0.0
  %2546 = vmatmul.mubr.f32.gmra.mrb[0].mxu0 %v2461
  %v2547 = vpop.f32.mrb[0].mxu0
  %v2548 = vadd.f32 %v2444, %v2547
  %v2549 = vpop.f32.mrb[0].mxu0
  %v2550 = vadd.f32 %v2448, %v2549
  %2551 = vdwg.mxu0
  %v2552 = vmax.f32 %v2530, 0.0
  %v2553 = vmax.f32 %v2532, 0.0
  %v2554 = vmax.f32 %v2536, 0.0
  %v2555 = vmax.f32 %v2538, 0.0
  %v2556 = vmax.f32 %v2542, 0.0
  %v2557 = vmax.f32 %v2544, 0.0
  %v2558 = vmax.f32 %v2548, 0.0
  %v2559 = vmax.f32 %v2550, 0.0
  %v2560 = vld [vmem:[%s18] sm:$0xff]
  %v2561 = vld [vmem:[%s18 + $0x8] sm:$0xff]
  %v2562 = vld [vmem:[%s18 + $0x10] sm:$0xff]
  %v2563 = vld [vmem:[%s18 + $0x18] sm:$0xff]
  %v2564 = vld [vmem:[%s18 + $0x20] sm:$0xff]
  %v2565 = vld [vmem:[%s18 + $0x28] sm:$0xff]
  %v2566 = vld [vmem:[%s18 + $0x30] sm:$0xff]
  %v2567 = vld [vmem:[%s18 + $0x38] sm:$0xff]
  %v2568 = vld [vmem:[%s18 + $0x40] sm:$0xff]
  %v2569 = vld [vmem:[%s18 + $0x48] sm:$0xff]
  %v2570 = vld [vmem:[%s18 + $0x50] sm:$0xff]
  %v2571 = vld [vmem:[%s18 + $0x58] sm:$0xff]
  %v2572 = vld [vmem:[%s18 + $0x60] sm:$0xff]
  %v2573 = vld [vmem:[%s18 + $0x68] sm:$0xff]
  %v2574 = vld [vmem:[%s18 + $0x70] sm:$0xff]
  %v2575 = vld [vmem:[%s18 + $0x78] sm:$0xff]
  %v2576 = vld [vmem:[%s18 + $0x80] sm:$0xff]
  %v2577 = vld [vmem:[%s18 + $0x88] sm:$0xff]
  %v2578 = vld [vmem:[%s18 + $0x90] sm:$0xff]
  %v2579 = vld [vmem:[%s18 + $0x98] sm:$0xff]
  %v2580 = vld [vmem:[%s18 + $0xa0] sm:$0xff]
  %v2581 = vld [vmem:[%s18 + $0xa8] sm:$0xff]
  %v2582 = vld [vmem:[%s18 + $0xb0] sm:$0xff]
  %v2583 = vld [vmem:[%s18 + $0xb8] sm:$0xff]
  %v2584 = vld [vmem:[%s18 + $0xc0] sm:$0xff]
  %v2585 = vld [vmem:[%s18 + $0xc8] sm:$0xff]
  %v2586 = vld [vmem:[%s18 + $0xd0] sm:$0xff]
  %v2587 = vld [vmem:[%s18 + $0xd8] sm:$0xff]
  %v2588 = vld [vmem:[%s18 + $0xe0] sm:$0xff]
  %v2589 = vld [vmem:[%s18 + $0xe8] sm:$0xff]
  %v2590 = vld [vmem:[%s18 + $0xf0] sm:$0xff]
  %v2591 = vld [vmem:[%s18 + $0xf8] sm:$0xff]
  %v2592 = vld [vmem:[%s19] sm:$0x1]
  %v2594 = vlaneseq
  %v2595 = vshrl.u32 %v2594, 7
  %v2596 = vsub.s32 0, %v2595
  %v2597 = vrot.slane %v2592, %v2596
  %2599 = vmatprep.subr.mxu0 0.0
  %2600 = vmatpush1.msra.mxu0 %v2560
  %2601 = vmatprep.subr.mxu0 0.0
  %2602 = vmatpush1.msra.mxu0 %v2561
  %2603 = vmatprep.subr.mxu0 0.0
  %2604 = vmatpush1.msra.mxu0 %v2562
  %2605 = vmatprep.subr.mxu0 0.0
  %2606 = vmatpush1.msra.mxu0 %v2563
  %2607 = vmatprep.subr.mxu0 0.0
  %2608 = vmatpush1.msra.mxu0 %v2564
  %2609 = vmatprep.subr.mxu0 0.0
  %2610 = vmatpush1.msra.mxu0 %v2565
  %2611 = vmatprep.subr.mxu0 0.0
  %2612 = vmatpush1.msra.mxu0 %v2566
  %2613 = vmatprep.subr.mxu0 0.0
  %2614 = vmatpush1.msra.mxu0 %v2567
  %2615 = vmatprep.subr.mxu0 0.0
  %2616 = vmatpush1.msra.mxu0 %v2568
  %2617 = vmatprep.subr.mxu0 0.0
  %2618 = vmatpush1.msra.mxu0 %v2569
  %2619 = vmatprep.subr.mxu0 0.0
  %2620 = vmatpush1.msra.mxu0 %v2570
  %2621 = vmatprep.subr.mxu0 0.0
  %2622 = vmatpush1.msra.mxu0 %v2571
  %2623 = vmatprep.subr.mxu0 0.0
  %2624 = vmatpush1.msra.mxu0 %v2572
  %2625 = vmatprep.subr.mxu0 0.0
  %2626 = vmatpush1.msra.mxu0 %v2573
  %2627 = vmatprep.subr.mxu0 0.0
  %2628 = vmatpush1.msra.mxu0 %v2574
  %2629 = vmatprep.subr.mxu0 0.0
  %2630 = vmatpush1.msra.mxu0 %v2575
  %2631 = vmatprep.subr.mxu0 0.0
  %2632 = vmatpush1.msra.mxu0 %v2576
  %2633 = vmatprep.subr.mxu0 0.0
  %2634 = vmatpush1.msra.mxu0 %v2577
  %2635 = vmatprep.subr.mxu0 0.0
  %2636 = vmatpush1.msra.mxu0 %v2578
  %2637 = vmatprep.subr.mxu0 0.0
  %2638 = vmatpush1.msra.mxu0 %v2579
  %2639 = vmatprep.subr.mxu0 0.0
  %2640 = vmatpush1.msra.mxu0 %v2580
  %2641 = vmatprep.subr.mxu0 0.0
  %2642 = vmatpush1.msra.mxu0 %v2581
  %2643 = vmatprep.subr.mxu0 0.0
  %2644 = vmatpush1.msra.mxu0 %v2582
  %2645 = vmatprep.subr.mxu0 0.0
  %2646 = vmatpush1.msra.mxu0 %v2583
  %2647 = vmatprep.subr.mxu0 0.0
  %2648 = vmatpush1.msra.mxu0 %v2584
  %2649 = vmatprep.subr.mxu0 0.0
  %2650 = vmatpush1.msra.mxu0 %v2585
  %2651 = vmatprep.subr.mxu0 0.0
  %2652 = vmatpush1.msra.mxu0 %v2586
  %2653 = vmatprep.subr.mxu0 0.0
  %2654 = vmatpush1.msra.mxu0 %v2587
  %2655 = vmatprep.subr.mxu0 0.0
  %2656 = vmatpush1.msra.mxu0 %v2588
  %2657 = vmatprep.subr.mxu0 0.0
  %2658 = vmatpush1.msra.mxu0 %v2589
  %2659 = vmatprep.subr.mxu0 0.0
  %2660 = vmatpush1.msra.mxu0 %v2590
  %2661 = vmatprep.subr.mxu0 0.0
  %2662 = vmatpush1.msra.mxu0 %v2591
  %2663 = vmatprep.mubr.f32.mxu0 %v2553
  %2664 = vmatmul.mubr.f32.gmra.mrb[0].mxu0 %v2552
  %v2665 = vpop.f32.mrb[0].mxu0
  %v2666 = vadd.f32 %v2597, %v2665
  %v2667 = vpop.f32.mrb[0].mxu0
  %2668 = vmatprep.mubr.f32.mxu0 %v2555
  %2669 = vmatmul.mubr.f32.gmra.mrb[0].mxu0 %v2554
  %v2670 = vpop.f32.mrb[0].mxu0
  %v2671 = vadd.f32 %v2597, %v2670
  %v2672 = vpop.f32.mrb[0].mxu0
  %2673 = vmatprep.mubr.f32.mxu0 %v2557
  %2674 = vmatmul.mubr.f32.gmra.mrb[0].mxu0 %v2556
  %v2675 = vpop.f32.mrb[0].mxu0
  %v2676 = vadd.f32 %v2597, %v2675
  %v2677 = vpop.f32.mrb[0].mxu0
  %2678 = vmatprep.mubr.f32.mxu0 %v2559
  %2679 = vmatmul.mubr.f32.gmra.mrb[0].mxu0 %v2558
  %v2680 = vpop.f32.mrb[0].mxu0
  %v2681 = vadd.f32 %v2597, %v2680
  %v2682 = vpop.f32.mrb[0].mxu0
  %2683 = vdwg.mxu0
  %2684 = vst.msk [vmem:[%s20] sm:$0xff] %vm900, %v2666
  %2685 = vst.msk [vmem:[%s20 + $0x8] sm:$0xff] %vm900, %v2671
  %2686 = vst.msk [vmem:[%s20 + $0x10] sm:$0xff] %vm900, %v2676
  %2687 = vst.msk [vmem:[%s20 + $0x18] sm:$0xff] %vm900, %v2681
  // Predicated region
  $region82: #{encoder_forward.1} parent=0 // pred_check
    _
  $region83: #{encoder_forward.1} parent=0 // pred_check_branch
    %2689 = sbr.rel (0) target = $region85
  $region84: #{encoder_forward.1} parent=0 // pred_region
    _
  $region85: #{encoder_forward.1} parent=0 // pred_fallthru
    _
  // Predicated region
  $region86: #{encoder_forward.1} parent=0 // pred_check
    _
  $region87: #{encoder_forward.1} parent=0 // pred_check_branch
    %2691 = sbr.rel (0) target = $region89
  $region88: #{encoder_forward.1} parent=0 // pred_region
    _
  $region89: #{encoder_forward.1} parent=0 // pred_fallthru
    _

</llo_original>
